<compile_context>
chip_gen: v6e
topology: v6e:2x2x1
jax: 0.10.0
libtpu: 0.0.40
codegen_flags: <defaults>
</compile_context>

<pallas_src>
import jax
import jax.numpy as jnp
from jax.experimental import pallas as pl
from jax.experimental.pallas import tpu as pltpu

_LEAKY_SLOPE = 0.2


def _word_discriminator_kernel(x_ref, w0_ref, b0_ref, w1_ref, b1_ref,
                               w2_ref, b2_ref, o_ref):
    """One batch tile of the MLP forward.

    x_ref : (TILE_N, emb) f32/bf16
    w0_ref: (emb, hid) bf16   b0_ref: (1, hid) f32
    w1_ref: (hid, hid) bf16   b1_ref: (1, hid) f32
    w2_ref: (1, hid)  bf16    b2_ref: (1, 1)  f32   (final Linear(hid, 1) as a row)
    o_ref : (1, TILE_N) f32   (lane-dense per-tile output)
    """
    x = x_ref[...].astype(jnp.bfloat16)   # no-op if x is already bf16

    # Layer 0: Linear(emb -> hid) + LeakyReLU(0.2)
    h = jnp.dot(x, w0_ref[...], preferred_element_type=jnp.float32) + b0_ref[...]
    h = jnp.maximum(h, _LEAKY_SLOPE * h)

    # Layer 1: Linear(hid -> hid) + LeakyReLU(0.2)
    h = jnp.dot(h.astype(jnp.bfloat16), w1_ref[...],
                preferred_element_type=jnp.float32) + b1_ref[...]
    h = jnp.maximum(h, _LEAKY_SLOPE * h)

    # Final Linear(hid -> 1): contract hid of w2 (1, hid) with hid of h (TILE_N, hid)
    # (same dot_general form as q @ k.T) so the logits come out lane-major as
    # (1, TILE_N) and the output store is lane-dense.
    logits = jax.lax.dot_general(
        w2_ref[...], h.astype(jnp.bfloat16),
        dimension_numbers=(((1,), (1,)), ((), ())),
        preferred_element_type=jnp.float32) + b2_ref[...]

    o_ref[...] = jax.nn.sigmoid(logits)


def word_discriminator_forward(x, params, *, tile_n=512):
    """params = (w0, b0, w1, b1, w2, b2); w0/w1/w2 stored (in, out)/(1, hid) in bf16."""
    w0, b0, w1, b1, w2, b2 = params
    n, emb = x.shape
    hid = w0.shape[1]

    num_tiles = pl.cdiv(n, tile_n)
    if num_tiles == 1 and n > 256:
        # v7x has 2 TensorCores; split a single big tile so the "parallel" batch grid
        # can use both.  Harmless (one extra ~0.35us grid step) on 1-TC v5e/v6e.
        tile_n = max(128, ((pl.cdiv(n, 2) + 15) // 16) * 16)
        num_tiles = pl.cdiv(n, tile_n)

    # VMEM budget: single-buffered resident weights + double-buffered x/out tiles
    # + f32 activation temporaries; cap at 80% of this chip's physical VMEM.
    bytes_w = sum(int(a.size) * a.dtype.itemsize for a in (w0, b0, w1, b1, w2, b2))
    lanes = pl.cdiv(tile_n, 128) * 128
    est = (bytes_w                                   # resident weights (Buffered(1))
           + 2 * tile_n * emb * x.dtype.itemsize     # x tile, double buffered
           + 2 * 8 * lanes * 4                       # (1, tile_n) out tile, double buffered
           + 3 * tile_n * hid * 4)                   # f32 activation temporaries headroom
    try:
        vmem_phys = int(pltpu.get_tpu_info().vmem_capacity_bytes)
    except Exception:
        vmem_phys = 64 << 20                         # smallest per-TC VMEM (v7x)
    vmem_limit = int(min(int(0.8 * vmem_phys), max(32 << 20, est + (4 << 20))))

    cost = pl.CostEstimate(
        flops=2 * n * (emb * hid + hid * hid + hid),
        transcendentals=n,
        bytes_accessed=n * emb * x.dtype.itemsize + bytes_w + n * 4,
    )

    def build(single_buffer_weights):
        w_kwargs = dict(pipeline_mode=pl.Buffered(1)) if single_buffer_weights else {}
        const = lambda i: (0, 0)   # same block every step -> weights stay VMEM resident
        in_specs = [
            pl.BlockSpec((tile_n, emb), lambda i: (i, 0)),       # x tile (streamed)
            pl.BlockSpec((emb, hid), const, **w_kwargs),         # w0
            pl.BlockSpec((1, hid), const, **w_kwargs),           # b0
            pl.BlockSpec((hid, hid), const, **w_kwargs),         # w1
            pl.BlockSpec((1, hid), const, **w_kwargs),           # b1
            pl.BlockSpec((1, hid), const, **w_kwargs),           # w2
            pl.BlockSpec((1, 1), const, **w_kwargs),             # b2
        ]
        # Lane-dense output: one (1, tile_n) row per batch tile (full blocks, so the
        # ragged last x tile never causes a partial output write).
        out_specs = pl.BlockSpec((None, 1, tile_n), lambda i: (i, 0, 0))
        return pl.pallas_call(
            _word_discriminator_kernel,
            out_shape=jax.ShapeDtypeStruct((num_tiles, 1, tile_n), jnp.float32),
            grid=(num_tiles,),
            in_specs=in_specs,
            out_specs=out_specs,
            compiler_params=pltpu.CompilerParams(
                dimension_semantics=("parallel",),   # batch tiles over 2 TCs on v7x
                vmem_limit_bytes=vmem_limit,
            ),
            cost_estimate=cost,
        )

    try:
        out = build(True)(x, w0, b0, w1, b1, w2, b2)
    except Exception:
        # Fallback for runtimes without per-BlockSpec pipeline_mode support: default
        # double-buffered resident weights (correct, just ~2x the resident VMEM).
        out = build(False)(x, w0, b0, w1, b1, w2, b2)

    # .view(-1) in PyTorch; drop the ragged-tile padding rows.
    return out.reshape(-1)[:n]


def init_params(key, emb_dim, hid_dim, dis_layers=2):
    """Matches WordDiscriminator.init_params(): xavier_uniform 2-D weights, zero biases.

    Weights are stored transposed vs PyTorch ((in_dim, out_dim)) so y = x @ W + b; the
    matmul weights (w0, w1, w2) are kept in bf16 (MXU operands), biases in f32.
    """
    assert dis_layers == 2, "kernel is specialised to dis_layers=2 (3 Linear layers)"
    k0, k1, k2 = jax.random.split(key, 3)

    def xavier(k, in_d, out_d, shape):
        bound = (6.0 / (in_d + out_d)) ** 0.5
        return jax.random.uniform(k, shape, jnp.float32, -bound, bound)

    w0 = xavier(k0, emb_dim, hid_dim, (emb_dim, hid_dim)).astype(jnp.bfloat16)
    b0 = jnp.zeros((1, hid_dim), jnp.float32)
    w1 = xavier(k1, hid_dim, hid_dim, (hid_dim, hid_dim)).astype(jnp.bfloat16)
    b1 = jnp.zeros((1, hid_dim), jnp.float32)
    w2 = xavier(k2, hid_dim, 1, (1, hid_dim)).astype(jnp.bfloat16)  # Linear(hid,1) row
    b2 = jnp.zeros((1, 1), jnp.float32)
    return (w0, b0, w1, b1, w2, b2)


def reference_forward(x, params):
    """Precision-matched pure-JAX reference (bf16 matmul operands, f32 accumulate)."""
    w0, b0, w1, b1, w2, b2 = params
    h = jnp.dot(x.astype(jnp.bfloat16), w0, preferred_element_type=jnp.float32) + b0
    h = jnp.maximum(h, _LEAKY_SLOPE * h)
    h = jnp.dot(h.astype(jnp.bfloat16), w1, preferred_element_type=jnp.float32) + b1
    h = jnp.maximum(h, _LEAKY_SLOPE * h)
    logits = jax.lax.dot_general(h.astype(jnp.bfloat16), w2,
                                 dimension_numbers=(((1,), (1,)), ((), ())),
                                 preferred_element_type=jnp.float32) + b2
    return jax.nn.sigmoid(logits).reshape(-1)


def reference_forward_f32(x, params):
    """Full-f32 reference matching the PyTorch module's math."""
    w0, b0, w1, b1, w2, b2 = params
    h = x @ w0.astype(jnp.float32) + b0
    h = jnp.where(h > 0, h, _LEAKY_SLOPE * h)
    h = h @ w1.astype(jnp.float32) + b1
    h = jnp.where(h > 0, h, _LEAKY_SLOPE * h)
    logits = h @ w2.astype(jnp.float32).T + b2
    return jax.nn.sigmoid(logits).reshape(-1)


if __name__ == "__main__":
    # Small shapes consistent with the module: N words of emb_dim features, dis_layers=2
    # hidden layers of width hid_dim, final scalar logit.  N=300 deliberately exercises
    # the 2-tile split heuristic and the ragged (partial) final batch tile.
    N, EMB_DIM, HID_DIM, DIS_LAYERS = 300, 64, 128, 2

    key = jax.random.PRNGKey(0)
    kx, kp = jax.random.split(key)
    x = jax.random.normal(kx, (N, EMB_DIM), jnp.float32)
    params = init_params(kp, EMB_DIM, HID_DIM, DIS_LAYERS)

    out = jax.block_until_ready(word_discriminator_forward(x, params))

    ref = reference_forward(x, params)
    ref_f32 = reference_forward_f32(x, params)
    assert out.shape == (N,), out.shape
    assert bool(jnp.all(jnp.isfinite(out))), "non-finite outputs"
    assert jnp.allclose(out, ref, atol=1e-4, rtol=1e-4), (out, ref)
    assert jnp.allclose(out, ref_f32, atol=2e-2, rtol=2e-2), (out, ref_f32)

    print("KERNEL_OK")
</pallas_src>

<mosaic_0001>
module attributes {stable_mosaic.version = 11 : i64} {
  func.func @_word_discriminator_kernel(%arg0: i32, %arg1: memref<160x64xf32, #tpu.memory_space<vmem>>, %arg2: memref<64x128xbf16, #tpu.memory_space<vmem>>, %arg3: memref<1x128xf32, #tpu.memory_space<vmem>>, %arg4: memref<128x128xbf16, #tpu.memory_space<vmem>>, %arg5: memref<1x128xf32, #tpu.memory_space<vmem>>, %arg6: memref<1x128xbf16, #tpu.memory_space<vmem>>, %arg7: memref<1x1xf32, #tpu.memory_space<vmem>>, %arg8: memref<1x1x160xf32, #tpu.memory_space<vmem>>) attributes {dimension_semantics = [#tpu.dimension_semantics<parallel>], iteration_bounds = array<i64: 2>, scalar_prefetch = 0 : i64, scratch_operands = 0 : i64, tpu.core_type = #tpu.core_type<tc>, window_params = [{transform_indices = @transform_0, window_bounds = array<i64: 160, 64>}, {pipeline_mode = #tpu.pipeline_mode<synchronous>, transform_indices = @transform_1, window_bounds = array<i64: 64, 128>}, {pipeline_mode = #tpu.pipeline_mode<synchronous>, transform_indices = @transform_2, window_bounds = array<i64: 1, 128>}, {pipeline_mode = #tpu.pipeline_mode<synchronous>, transform_indices = @transform_3, window_bounds = array<i64: 128, 128>}, {pipeline_mode = #tpu.pipeline_mode<synchronous>, transform_indices = @transform_4, window_bounds = array<i64: 1, 128>}, {pipeline_mode = #tpu.pipeline_mode<synchronous>, transform_indices = @transform_5, window_bounds = array<i64: 1, 128>}, {pipeline_mode = #tpu.pipeline_mode<synchronous>, transform_indices = @transform_6, window_bounds = array<i64: 1, 1>}, {transform_indices = @transform_7, window_bounds = array<i64: 1, 1, 160>}]} {
    %c0 = arith.constant 0 : index
    %c0_0 = arith.constant 0 : index
    %0 = vector.load %arg1[%c0, %c0_0] : memref<160x64xf32, #tpu.memory_space<vmem>>, vector<160x64xf32>
    %1 = arith.truncf %0 : vector<160x64xf32> to vector<160x64xbf16>
    %c0_1 = arith.constant 0 : index
    %c0_2 = arith.constant 0 : index
    %2 = vector.load %arg2[%c0_1, %c0_2] : memref<64x128xbf16, #tpu.memory_space<vmem>>, vector<64x128xbf16>
    %cst = arith.constant dense<0.000000e+00> : vector<160x128xf32>
    %3 = tpu.matmul %1, %2, %cst {dimension_numbers = #tpu.dot_dimension_numbers<[1], [0], [0], [1], [0, 0, 1, 1], [], []>} : vector<160x64xbf16>, vector<64x128xbf16>, vector<160x128xf32> -> vector<160x128xf32>
    %c0_3 = arith.constant 0 : index
    %c0_4 = arith.constant 0 : index
    %4 = vector.load %arg3[%c0_3, %c0_4] : memref<1x128xf32, #tpu.memory_space<vmem>>, vector<1x128xf32>
    %5 = vector.broadcast %4 : vector<1x128xf32> to vector<160x128xf32>
    %6 = arith.addf %3, %5 : vector<160x128xf32>
    %cst_5 = arith.constant 2.000000e-01 : f32
    %7 = vector.broadcast %cst_5 : f32 to vector<160x128xf32>
    %8 = arith.mulf %7, %6 : vector<160x128xf32>
    %9 = arith.maximumf %6, %8 : vector<160x128xf32>
    %10 = arith.truncf %9 : vector<160x128xf32> to vector<160x128xbf16>
    %c0_6 = arith.constant 0 : index
    %c0_7 = arith.constant 0 : index
    %11 = vector.load %arg4[%c0_6, %c0_7] : memref<128x128xbf16, #tpu.memory_space<vmem>>, vector<128x128xbf16>
    %cst_8 = arith.constant dense<0.000000e+00> : vector<160x128xf32>
    %12 = tpu.matmul %10, %11, %cst_8 {dimension_numbers = #tpu.dot_dimension_numbers<[1], [0], [0], [1], [0, 0, 1, 1], [], []>} : vector<160x128xbf16>, vector<128x128xbf16>, vector<160x128xf32> -> vector<160x128xf32>
    %c0_9 = arith.constant 0 : index
    %c0_10 = arith.constant 0 : index
    %13 = vector.load %arg5[%c0_9, %c0_10] : memref<1x128xf32, #tpu.memory_space<vmem>>, vector<1x128xf32>
    %14 = vector.broadcast %13 : vector<1x128xf32> to vector<160x128xf32>
    %15 = arith.addf %12, %14 : vector<160x128xf32>
    %cst_11 = arith.constant 2.000000e-01 : f32
    %16 = vector.broadcast %cst_11 : f32 to vector<160x128xf32>
    %17 = arith.mulf %16, %15 : vector<160x128xf32>
    %18 = arith.maximumf %15, %17 : vector<160x128xf32>
    %c0_12 = arith.constant 0 : index
    %c0_13 = arith.constant 0 : index
    %19 = vector.load %arg6[%c0_12, %c0_13] : memref<1x128xbf16, #tpu.memory_space<vmem>>, vector<1x128xbf16>
    %20 = arith.truncf %18 : vector<160x128xf32> to vector<160x128xbf16>
    %cst_14 = arith.constant dense<0.000000e+00> : vector<1x160xf32>
    %21 = tpu.matmul %19, %20, %cst_14 {dimension_numbers = #tpu.dot_dimension_numbers<[1], [1], [0], [0], [0, 0, 1, 0], [], []>} : vector<1x128xbf16>, vector<160x128xbf16>, vector<1x160xf32> -> vector<1x160xf32>
    %c0_15 = arith.constant 0 : index
    %c0_16 = arith.constant 0 : index
    %22 = vector.load %arg7[%c0_15, %c0_16] : memref<1x1xf32, #tpu.memory_space<vmem>>, vector<1x1xf32>
    %23 = vector.broadcast %22 : vector<1x1xf32> to vector<1x160xf32>
    %24 = arith.addf %21, %23 : vector<1x160xf32>
    %25 = arith.negf %24 : vector<1x160xf32>
    %26 = math.exp %25 : vector<1x160xf32>
    %cst_17 = arith.constant 1.000000e+00 : f32
    %27 = vector.broadcast %cst_17 : f32 to vector<1x160xf32>
    %28 = arith.addf %27, %26 : vector<1x160xf32>
    %29 = arith.divf %27, %28 : vector<1x160xf32>
    %c0_18 = arith.constant 0 : index
    %c0_19 = arith.constant 0 : index
    %c0_20 = arith.constant 0 : index
    %30 = vector.load %arg8[%c0_18, %c0_19, %c0_20] : memref<1x1x160xf32, #tpu.memory_space<vmem>>, vector<1x1x160xf32>
    %31 = vector.shape_cast %30 : vector<1x1x160xf32> to vector<1x160xf32>
    %32 = vector.shape_cast %29 : vector<1x160xf32> to vector<1x1x160xf32>
    tpu.vector_store %arg8[%c0_18, %c0_19, %c0_20], %32 {strides = array<i32>} : memref<1x1x160xf32, #tpu.memory_space<vmem>>, vector<1x1x160xf32>,
    return
  }
  func.func @transform_0(%arg0: i32) -> (i32, i32) {
    %c0_i32 = arith.constant 0 : i32
    %c0_i32_0 = arith.constant 0 : i32
    return %arg0, %c0_i32 : i32, i32
  }
  func.func @transform_1(%arg0: i32) -> (i32, i32) {
    %c0_i32 = arith.constant 0 : i32
    %c0_i32_0 = arith.constant 0 : i32
    %c0_i32_1 = arith.constant 0 : i32
    return %c0_i32, %c0_i32_0 : i32, i32
  }
  func.func @transform_2(%arg0: i32) -> (i32, i32) {
    %c0_i32 = arith.constant 0 : i32
    %c0_i32_0 = arith.constant 0 : i32
    %c0_i32_1 = arith.constant 0 : i32
    return %c0_i32, %c0_i32_0 : i32, i32
  }
  func.func @transform_3(%arg0: i32) -> (i32, i32) {
    %c0_i32 = arith.constant 0 : i32
    %c0_i32_0 = arith.constant 0 : i32
    %c0_i32_1 = arith.constant 0 : i32
    return %c0_i32, %c0_i32_0 : i32, i32
  }
  func.func @transform_4(%arg0: i32) -> (i32, i32) {
    %c0_i32 = arith.constant 0 : i32
    %c0_i32_0 = arith.constant 0 : i32
    %c0_i32_1 = arith.constant 0 : i32
    return %c0_i32, %c0_i32_0 : i32, i32
  }
  func.func @transform_5(%arg0: i32) -> (i32, i32) {
    %c0_i32 = arith.constant 0 : i32
    %c0_i32_0 = arith.constant 0 : i32
    %c0_i32_1 = arith.constant 0 : i32
    return %c0_i32, %c0_i32_0 : i32, i32
  }
  func.func @transform_6(%arg0: i32) -> (i32, i32) {
    %c0_i32 = arith.constant 0 : i32
    %c0_i32_0 = arith.constant 0 : i32
    %c0_i32_1 = arith.constant 0 : i32
    return %c0_i32, %c0_i32_0 : i32, i32
  }
  func.func @transform_7(%arg0: i32) -> (i32, i32, i32) {
    %c0_i32 = arith.constant 0 : i32
    %c0_i32_0 = arith.constant 0 : i32
    %c0_i32_1 = arith.constant 0 : i32
    return %arg0, %c0_i32, %c0_i32_0 : i32, i32, i32
  }
}

module attributes {stable_mosaic.version = 11 : i64} {
  func.func @_word_discriminator_kernel(%arg0: i32, %arg1: memref<160x64xf32, #tpu.memory_space<vmem>>, %arg2: memref<64x128xbf16, #tpu.memory_space<vmem>>, %arg3: memref<1x128xf32, #tpu.memory_space<vmem>>, %arg4: memref<128x128xbf16, #tpu.memory_space<vmem>>, %arg5: memref<1x128xf32, #tpu.memory_space<vmem>>, %arg6: memref<1x128xbf16, #tpu.memory_space<vmem>>, %arg7: memref<1x1xf32, #tpu.memory_space<vmem>>, %arg8: memref<1x1x160xf32, #tpu.memory_space<vmem>>) attributes {dimension_semantics = [#tpu.dimension_semantics<parallel>], iteration_bounds = array<i64: 2>, scalar_prefetch = 0 : i64, scratch_operands = 0 : i64, tpu.core_type = #tpu.core_type<tc>, window_params = [{transform_indices = @transform_0, window_bounds = array<i64: 160, 64>}, {pipeline_mode = #tpu.pipeline_mode<synchronous>, transform_indices = @transform_1, window_bounds = array<i64: 64, 128>}, {pipeline_mode = #tpu.pipeline_mode<synchronous>, transform_indices = @transform_2, window_bounds = array<i64: 1, 128>}, {pipeline_mode = #tpu.pipeline_mode<synchronous>, transform_indices = @transform_3, window_bounds = array<i64: 128, 128>}, {pipeline_mode = #tpu.pipeline_mode<synchronous>, transform_indices = @transform_4, window_bounds = array<i64: 1, 128>}, {pipeline_mode = #tpu.pipeline_mode<synchronous>, transform_indices = @transform_5, window_bounds = array<i64: 1, 128>}, {pipeline_mode = #tpu.pipeline_mode<synchronous>, transform_indices = @transform_6, window_bounds = array<i64: 1, 1>}, {transform_indices = @transform_7, window_bounds = array<i64: 1, 1, 160>}]} {
    %c0 = arith.constant 0 : index
    %c0_0 = arith.constant 0 : index
    %0 = vector.load %arg1[%c0, %c0_0] : memref<160x64xf32, #tpu.memory_space<vmem>>, vector<160x64xf32>
    %1 = arith.truncf %0 : vector<160x64xf32> to vector<160x64xbf16>
    %c0_1 = arith.constant 0 : index
    %c0_2 = arith.constant 0 : index
    %2 = vector.load %arg2[%c0_1, %c0_2] : memref<64x128xbf16, #tpu.memory_space<vmem>>, vector<64x128xbf16>
    %cst = arith.constant dense<0.000000e+00> : vector<160x128xf32>
    %3 = tpu.matmul %1, %2, %cst {dimension_numbers = #tpu.dot_dimension_numbers<[1], [0], [0], [1], [0, 0, 1, 1], [], []>} : vector<160x64xbf16>, vector<64x128xbf16>, vector<160x128xf32> -> vector<160x128xf32>
    %c0_3 = arith.constant 0 : index
    %c0_4 = arith.constant 0 : index
    %4 = vector.load %arg3[%c0_3, %c0_4] : memref<1x128xf32, #tpu.memory_space<vmem>>, vector<1x128xf32>
    %5 = vector.broadcast %4 : vector<1x128xf32> to vector<160x128xf32>
    %6 = arith.addf %3, %5 : vector<160x128xf32>
    %cst_5 = arith.constant 2.000000e-01 : f32
    %7 = vector.broadcast %cst_5 : f32 to vector<160x128xf32>
    %8 = arith.mulf %7, %6 : vector<160x128xf32>
    %9 = arith.maximumf %6, %8 : vector<160x128xf32>
    %10 = arith.truncf %9 : vector<160x128xf32> to vector<160x128xbf16>
    %c0_6 = arith.constant 0 : index
    %c0_7 = arith.constant 0 : index
    %11 = vector.load %arg4[%c0_6, %c0_7] : memref<128x128xbf16, #tpu.memory_space<vmem>>, vector<128x128xbf16>
    %cst_8 = arith.constant dense<0.000000e+00> : vector<160x128xf32>
    %12 = tpu.matmul %10, %11, %cst_8 {dimension_numbers = #tpu.dot_dimension_numbers<[1], [0], [0], [1], [0, 0, 1, 1], [], []>} : vector<160x128xbf16>, vector<128x128xbf16>, vector<160x128xf32> -> vector<160x128xf32>
    %c0_9 = arith.constant 0 : index
    %c0_10 = arith.constant 0 : index
    %13 = vector.load %arg5[%c0_9, %c0_10] : memref<1x128xf32, #tpu.memory_space<vmem>>, vector<1x128xf32>
    %14 = vector.broadcast %13 : vector<1x128xf32> to vector<160x128xf32>
    %15 = arith.addf %12, %14 : vector<160x128xf32>
    %cst_11 = arith.constant 2.000000e-01 : f32
    %16 = vector.broadcast %cst_11 : f32 to vector<160x128xf32>
    %17 = arith.mulf %16, %15 : vector<160x128xf32>
    %18 = arith.maximumf %15, %17 : vector<160x128xf32>
    %c0_12 = arith.constant 0 : index
    %c0_13 = arith.constant 0 : index
    %19 = vector.load %arg6[%c0_12, %c0_13] : memref<1x128xbf16, #tpu.memory_space<vmem>>, vector<1x128xbf16>
    %20 = arith.truncf %18 : vector<160x128xf32> to vector<160x128xbf16>
    %cst_14 = arith.constant dense<0.000000e+00> : vector<1x160xf32>
    %21 = tpu.matmul %19, %20, %cst_14 {dimension_numbers = #tpu.dot_dimension_numbers<[1], [1], [0], [0], [0, 0, 1, 0], [], []>} : vector<1x128xbf16>, vector<160x128xbf16>, vector<1x160xf32> -> vector<1x160xf32>
    %c0_15 = arith.constant 0 : index
    %c0_16 = arith.constant 0 : index
    %22 = vector.load %arg7[%c0_15, %c0_16] : memref<1x1xf32, #tpu.memory_space<vmem>>, vector<1x1xf32>
    %23 = vector.broadcast %22 : vector<1x1xf32> to vector<1x160xf32>
    %24 = arith.addf %21, %23 : vector<1x160xf32>
    %25 = arith.negf %24 : vector<1x160xf32>
    %26 = math.exp %25 : vector<1x160xf32>
    %cst_17 = arith.constant 1.000000e+00 : f32
    %27 = vector.broadcast %cst_17 : f32 to vector<1x160xf32>
    %28 = arith.addf %27, %26 : vector<1x160xf32>
    %29 = arith.divf %27, %28 : vector<1x160xf32>
    %c0_18 = arith.constant 0 : index
    %c0_19 = arith.constant 0 : index
    %c0_20 = arith.constant 0 : index
    %30 = vector.load %arg8[%c0_18, %c0_19, %c0_20] : memref<1x1x160xf32, #tpu.memory_space<vmem>>, vector<1x1x160xf32>
    %31 = vector.shape_cast %30 : vector<1x1x160xf32> to vector<1x160xf32>
    %32 = vector.shape_cast %29 : vector<1x160xf32> to vector<1x1x160xf32>
    tpu.vector_store %arg8[%c0_18, %c0_19, %c0_20], %32 {strides = array<i32>} : memref<1x1x160xf32, #tpu.memory_space<vmem>>, vector<1x1x160xf32>,
    return
  }
  func.func @transform_0(%arg0: i32) -> (i32, i32) {
    %c0_i32 = arith.constant 0 : i32
    %c0_i32_0 = arith.constant 0 : i32
    return %arg0, %c0_i32 : i32, i32
  }
  func.func @transform_1(%arg0: i32) -> (i32, i32) {
    %c0_i32 = arith.constant 0 : i32
    %c0_i32_0 = arith.constant 0 : i32
    %c0_i32_1 = arith.constant 0 : i32
    return %c0_i32, %c0_i32_0 : i32, i32
  }
  func.func @transform_2(%arg0: i32) -> (i32, i32) {
    %c0_i32 = arith.constant 0 : i32
    %c0_i32_0 = arith.constant 0 : i32
    %c0_i32_1 = arith.constant 0 : i32
    return %c0_i32, %c0_i32_0 : i32, i32
  }
  func.func @transform_3(%arg0: i32) -> (i32, i32) {
    %c0_i32 = arith.constant 0 : i32
    %c0_i32_0 = arith.constant 0 : i32
    %c0_i32_1 = arith.constant 0 : i32
    return %c0_i32, %c0_i32_0 : i32, i32
  }
  func.func @transform_4(%arg0: i32) -> (i32, i32) {
    %c0_i32 = arith.constant 0 : i32
    %c0_i32_0 = arith.constant 0 : i32
    %c0_i32_1 = arith.constant 0 : i32
    return %c0_i32, %c0_i32_0 : i32, i32
  }
  func.func @transform_5(%arg0: i32) -> (i32, i32) {
    %c0_i32 = arith.constant 0 : i32
    %c0_i32_0 = arith.constant 0 : i32
    %c0_i32_1 = arith.constant 0 : i32
    return %c0_i32, %c0_i32_0 : i32, i32
  }
  func.func @transform_6(%arg0: i32) -> (i32, i32) {
    %c0_i32 = arith.constant 0 : i32
    %c0_i32_0 = arith.constant 0 : i32
    %c0_i32_1 = arith.constant 0 : i32
    return %c0_i32, %c0_i32_0 : i32, i32
  }
  func.func @transform_7(%arg0: i32) -> (i32, i32, i32) {
    %c0_i32 = arith.constant 0 : i32
    %c0_i32_0 = arith.constant 0 : i32
    %c0_i32_1 = arith.constant 0 : i32
    return %arg0, %c0_i32, %c0_i32_0 : i32, i32, i32
  }
}

</mosaic_0001>

<llo_original>
// kernel: tpu_custom_call.1
$region0: #{tpu_custom_call.1}
  #allocation0 [shape = 'u32[]', space=smem, size = 0x4, offset = 0x4, fixed_abs, tag = 'smem constant byte address 0x4 - core index']
  #allocation1 [shape = 'u32[144,128]{1,0:T(1,128)}', space=vmem, size = 0x12000, scoped, tag = 'internal scratch']
  #allocation2 [shape = 'f32[1,1]{1,0:T(1,128)S(1)}', space=vmem, size = 0x200, scoped, tag = 'scoped memory for tpu_custom_call.1']
  %s0 = inlined_call_operand.vmem [shape: f32[300,64], index: 0, kind: input, shape index: {}]
  %s1 = inlined_call_operand.vmem [shape: bf16[64,128], index: 1, kind: input, shape index: {}]
  %s2 = inlined_call_operand.vmem [shape: f32[1,128], index: 2, kind: input, shape index: {}]
  %s3 = inlined_call_operand.vmem [shape: bf16[128,128], index: 3, kind: input, shape index: {}]
  %s4 = inlined_call_operand.vmem [shape: f32[1,128], index: 4, kind: input, shape index: {}]
  %s5 = inlined_call_operand.vmem [shape: bf16[1,128], index: 5, kind: input, shape index: {}]
  %s6 = inlined_call_operand.<no memory space> [shape: f32[1,1], index: 6, kind: input, shape index: {}]
  %s7 = inlined_call_operand.hbm [shape: f32[2,1,160], index: 7, kind: output, shape index: {}]
  %s8 = sld [smem:[#allocation0]]
  $region61: #{tpu_custom_call.1} parent=0
    _
  %s10 = ssub.s32 1, %s8
  %s11 = scalar_select 0, %s10, %s8
  %v12 = vstv %s6
  %13 = vst [vmem:[#allocation2] sm:$0x1] %v12
  $region1: #{tpu_custom_call.1} parent=0
    #allocation3 [shape = 'u8[2048]{0}', space=vmem, size = 0x800, scoped, tag = 'output window, operand 0']
    #allocation4 [shape = 's32[2]{0}', space=sflag, size = 0x8, scoped, tag = 'scoped memory for tpu_custom_call.1']
    %14 = vsyncpa [#allocation4], 0
    %s15 = scalar_lea.sflag [#allocation4], 1
    %16 = vsyncpa %s15, 0
    loop: start=0, step=1, limit=4
    $region2: #{tpu_custom_call.1} parent=1 // loop_pre_header
      _
    $region3: #{tpu_custom_call.1} parent=1 // loop_header
      %s18 = sphi 0, %s22
      %p19 = scmp.ge.s32.totalorder %s18, 4
      %s28 = sphi 0, %s30
      %s31 = sphi 0, %s28
      %s32 = sphi 0, %s31
      %s48 = sphi 0, %s32
      %s52 = sphi 0, %s52
      %s54 = sphi 0, %s52
      %s55 = sphi 0, %s54
      %s69 = sphi 0, %s55
      %s73 = sphi 0, %s73
      %s75 = sphi 0, %s73
      %s76 = sphi 0, %s75
      %s90 = sphi 0, %s76
      %s94 = sphi 0, %s94
      %s96 = sphi 0, %s94
      %s97 = sphi 0, %s96
      %s111 = sphi 0, %s97
      %s115 = sphi 0, %s115
      %s117 = sphi 0, %s115
      %s118 = sphi 0, %s117
      %s132 = sphi 0, %s118
      %s136 = sphi 0, %s136
      %s138 = sphi 0, %s136
      %s139 = sphi 0, %s138
      %s153 = sphi 0, %s139
      %s157 = sphi 0, %s157
      %s159 = sphi 0, %s157
      %s160 = sphi 0, %s159
      %s174 = sphi 0, %s160
      %s180 = sphi 0, %s182
      %s183 = sphi 0, %s180
      %s184 = sphi 0, %s183
      %s200 = sphi 0, %s184
    $region4: #{tpu_custom_call.1} parent=1 // loop_header_branch
      %21 = sbr.rel (%p19) target = $region8
    $region5: #{tpu_custom_call.1} parent=1 // loop_body
      %s23 = ssub.s32 %s18, 1
      %s24 = ssub.s32 %s18, 2
      %s25 = sadd.s32 %s18, 1
      %s26 = ssub.s32 %s18, %s25
      %p27 = scmp.eq.s32.totalorder %s26, 0
      %s29 = sadd.s32 %s28, 1
      %s30 = scalar_select %p27, %s28, %s29
      %p33 = pneg %p27
      %p34 = scmp.eq.s32.totalorder %s18, 1
      %p35 = por %p33, %p34
      %p36 = scmp.ne.s32.totalorder %s28, %s31
      %p37 = scmp.eq.s32.totalorder %s18, 0
      %p38 = por %p36, %p37
      %p39 = scmp.ne.s32.totalorder %s28, %s31
      %p40 = scmp.eq.s32.totalorder %s23, 1
      %p41 = por %p39, %p40
      %p42 = scmp.ne.s32.totalorder %s31, %s32
      %p43 = scmp.eq.s32.totalorder %s23, 0
      %p44 = por %p42, %p43
      %p45 = scmp.ne.s32.totalorder %s31, %s32
      %p46 = scmp.eq.s32.totalorder %s24, 1
      %p47 = por %p45, %p46
      %p49 = scmp.ne.s32.totalorder %s32, %s48
      %p50 = scmp.eq.s32.totalorder %s24, 0
      %p51 = por %p49, %p50
      %s53 = sadd.s32 %s52, 1
      %p56 = scmp.eq.s32.totalorder %s18, 1
      %p57 = scmp.ne.s32.totalorder %s52, %s54
      %p58 = scmp.eq.s32.totalorder %s18, 0
      %p59 = por %p57, %p58
      %p60 = scmp.ne.s32.totalorder %s52, %s54
      %p61 = scmp.eq.s32.totalorder %s23, 1
      %p62 = por %p60, %p61
      %p63 = scmp.ne.s32.totalorder %s54, %s55
      %p64 = scmp.eq.s32.totalorder %s23, 0
      %p65 = por %p63, %p64
      %p66 = scmp.ne.s32.totalorder %s54, %s55
      %p67 = scmp.eq.s32.totalorder %s24, 1
      %p68 = por %p66, %p67
      %p70 = scmp.ne.s32.totalorder %s55, %s69
      %p71 = scmp.eq.s32.totalorder %s24, 0
      %p72 = por %p70, %p71
      %s74 = sadd.s32 %s73, 1
      %p77 = scmp.eq.s32.totalorder %s18, 1
      %p78 = scmp.ne.s32.totalorder %s73, %s75
      %p79 = scmp.eq.s32.totalorder %s18, 0
      %p80 = por %p78, %p79
      %p81 = scmp.ne.s32.totalorder %s73, %s75
      %p82 = scmp.eq.s32.totalorder %s23, 1
      %p83 = por %p81, %p82
      %p84 = scmp.ne.s32.totalorder %s75, %s76
      %p85 = scmp.eq.s32.totalorder %s23, 0
      %p86 = por %p84, %p85
      %p87 = scmp.ne.s32.totalorder %s75, %s76
      %p88 = scmp.eq.s32.totalorder %s24, 1
      %p89 = por %p87, %p88
      %p91 = scmp.ne.s32.totalorder %s76, %s90
      %p92 = scmp.eq.s32.totalorder %s24, 0
      %p93 = por %p91, %p92
      %s95 = sadd.s32 %s94, 1
      %p98 = scmp.eq.s32.totalorder %s18, 1
      %p99 = scmp.ne.s32.totalorder %s94, %s96
      %p100 = scmp.eq.s32.totalorder %s18, 0
      %p101 = por %p99, %p100
      %p102 = scmp.ne.s32.totalorder %s94, %s96
      %p103 = scmp.eq.s32.totalorder %s23, 1
      %p104 = por %p102, %p103
      %p105 = scmp.ne.s32.totalorder %s96, %s97
      %p106 = scmp.eq.s32.totalorder %s23, 0
      %p107 = por %p105, %p106
      %p108 = scmp.ne.s32.totalorder %s96, %s97
      %p109 = scmp.eq.s32.totalorder %s24, 1
      %p110 = por %p108, %p109
      %p112 = scmp.ne.s32.totalorder %s97, %s111
      %p113 = scmp.eq.s32.totalorder %s24, 0
      %p114 = por %p112, %p113
      %s116 = sadd.s32 %s115, 1
      %p119 = scmp.eq.s32.totalorder %s18, 1
      %p120 = scmp.ne.s32.totalorder %s115, %s117
      %p121 = scmp.eq.s32.totalorder %s18, 0
      %p122 = por %p120, %p121
      %p123 = scmp.ne.s32.totalorder %s115, %s117
      %p124 = scmp.eq.s32.totalorder %s23, 1
      %p125 = por %p123, %p124
      %p126 = scmp.ne.s32.totalorder %s117, %s118
      %p127 = scmp.eq.s32.totalorder %s23, 0
      %p128 = por %p126, %p127
      %p129 = scmp.ne.s32.totalorder %s117, %s118
      %p130 = scmp.eq.s32.totalorder %s24, 1
      %p131 = por %p129, %p130
      %p133 = scmp.ne.s32.totalorder %s118, %s132
      %p134 = scmp.eq.s32.totalorder %s24, 0
      %p135 = por %p133, %p134
      %s137 = sadd.s32 %s136, 1
      %p140 = scmp.eq.s32.totalorder %s18, 1
      %p141 = scmp.ne.s32.totalorder %s136, %s138
      %p142 = scmp.eq.s32.totalorder %s18, 0
      %p143 = por %p141, %p142
      %p144 = scmp.ne.s32.totalorder %s136, %s138
      %p145 = scmp.eq.s32.totalorder %s23, 1
      %p146 = por %p144, %p145
      %p147 = scmp.ne.s32.totalorder %s138, %s139
      %p148 = scmp.eq.s32.totalorder %s23, 0
      %p149 = por %p147, %p148
      %p150 = scmp.ne.s32.totalorder %s138, %s139
      %p151 = scmp.eq.s32.totalorder %s24, 1
      %p152 = por %p150, %p151
      %p154 = scmp.ne.s32.totalorder %s139, %s153
      %p155 = scmp.eq.s32.totalorder %s24, 0
      %p156 = por %p154, %p155
      %s158 = sadd.s32 %s157, 1
      %p161 = scmp.eq.s32.totalorder %s18, 1
      %p162 = scmp.ne.s32.totalorder %s157, %s159
      %p163 = scmp.eq.s32.totalorder %s18, 0
      %p164 = por %p162, %p163
      %p165 = scmp.ne.s32.totalorder %s157, %s159
      %p166 = scmp.eq.s32.totalorder %s23, 1
      %p167 = por %p165, %p166
      %p168 = scmp.ne.s32.totalorder %s159, %s160
      %p169 = scmp.eq.s32.totalorder %s23, 0
      %p170 = por %p168, %p169
      %p171 = scmp.ne.s32.totalorder %s159, %s160
      %p172 = scmp.eq.s32.totalorder %s24, 1
      %p173 = por %p171, %p172
      %p175 = scmp.ne.s32.totalorder %s160, %s174
      %p176 = scmp.eq.s32.totalorder %s24, 0
      %p177 = por %p175, %p176
      %s178 = ssub.s32 %s18, %s25
      %p179 = scmp.eq.s32.totalorder %s178, 0
      %s181 = sadd.s32 %s180, 1
      %s182 = scalar_select %p179, %s180, %s181
      %p185 = pneg %p179
      %p186 = scmp.eq.s32.totalorder %s18, 1
      %p187 = por %p185, %p186
      %p188 = scmp.ne.s32.totalorder %s180, %s183
      %p189 = scmp.eq.s32.totalorder %s18, 0
      %p190 = por %p188, %p189
      %p191 = scmp.ne.s32.totalorder %s180, %s183
      %p192 = scmp.eq.s32.totalorder %s23, 1
      %p193 = por %p191, %p192
      %p194 = scmp.ne.s32.totalorder %s183, %s184
      %p195 = scmp.eq.s32.totalorder %s23, 0
      %p196 = por %p194, %p195
      %p197 = scmp.ne.s32.totalorder %s183, %s184
      %p198 = scmp.eq.s32.totalorder %s24, 1
      %p199 = por %p197, %p198
      %p201 = scmp.ne.s32.totalorder %s184, %s200
      %p202 = scmp.eq.s32.totalorder %s24, 0
      %p203 = por %p201, %p202
      %p204 = scmp.le.s32.totalorder 1, %s18
      %p205 = scmp.lt.s32.totalorder %s18, 3
      %p206 = pnand %p204, %p205
      %p207 = pneg %p206
      // Predicated region
      $region9: #{tpu_custom_call.1} parent=5 // pred_check
        _
      $region10: #{tpu_custom_call.1} parent=5 // pred_check_branch
        %209 = sbr.rel (%p206) target = $region12
      $region11: #{tpu_custom_call.1} parent=5 // pred_region
        %s210 = ssub.s32 %s18, 1
        // Predicated region
        $region13: #{tpu_custom_call.1} parent=11 // pred_check
          %p211 = pneg %p65
        $region14: #{tpu_custom_call.1} parent=11 // pred_check_branch
          %213 = sbr.rel (%p211) target = $region16
        $region15: #{tpu_custom_call.1} parent=11 // pred_region
          _
        $region16: #{tpu_custom_call.1} parent=11 // pred_fallthru
          _
        // Predicated region
        $region17: #{tpu_custom_call.1} parent=11 // pred_check
          %p214 = pneg %p86
        $region18: #{tpu_custom_call.1} parent=11 // pred_check_branch
          %216 = sbr.rel (%p214) target = $region20
        $region19: #{tpu_custom_call.1} parent=11 // pred_region
          _
        $region20: #{tpu_custom_call.1} parent=11 // pred_fallthru
          _
        // Predicated region
        $region21: #{tpu_custom_call.1} parent=11 // pred_check
          %p217 = pneg %p107
        $region22: #{tpu_custom_call.1} parent=11 // pred_check_branch
          %219 = sbr.rel (%p217) target = $region24
        $region23: #{tpu_custom_call.1} parent=11 // pred_region
          _
        $region24: #{tpu_custom_call.1} parent=11 // pred_fallthru
          _
        // Predicated region
        $region25: #{tpu_custom_call.1} parent=11 // pred_check
          %p220 = pneg %p128
        $region26: #{tpu_custom_call.1} parent=11 // pred_check_branch
          %222 = sbr.rel (%p220) target = $region28
        $region27: #{tpu_custom_call.1} parent=11 // pred_region
          _
        $region28: #{tpu_custom_call.1} parent=11 // pred_fallthru
          _
        // Predicated region
        $region29: #{tpu_custom_call.1} parent=11 // pred_check
          %p223 = pneg %p149
        $region30: #{tpu_custom_call.1} parent=11 // pred_check_branch
          %225 = sbr.rel (%p223) target = $region32
        $region31: #{tpu_custom_call.1} parent=11 // pred_region
          _
        $region32: #{tpu_custom_call.1} parent=11 // pred_fallthru
          _
        // Predicated region
        $region33: #{tpu_custom_call.1} parent=11 // pred_check
          %p226 = pneg %p170
        $region34: #{tpu_custom_call.1} parent=11 // pred_check_branch
          %228 = sbr.rel (%p226) target = $region36
        $region35: #{tpu_custom_call.1} parent=11 // pred_region
          _
        $region36: #{tpu_custom_call.1} parent=11 // pred_fallthru
          _
      $region12: #{tpu_custom_call.1} parent=5 // pred_fallthru
        _
      %p229 = scmp.lt.s32.totalorder %s18, 2
      // Predicated region
      $region37: #{tpu_custom_call.1} parent=5 // pred_check
        %p230 = pneg %p229
      $region38: #{tpu_custom_call.1} parent=5 // pred_check_branch
        %232 = sbr.rel (%p230) target = $region40
      $region39: #{tpu_custom_call.1} parent=5 // pred_region
        // Predicated region
        $region41: #{tpu_custom_call.1} parent=39 // pred_check
          %p233 = pneg %p38
        $region42: #{tpu_custom_call.1} parent=39 // pred_check_branch
          %235 = sbr.rel (%p233) target = $region44
        $region43: #{tpu_custom_call.1} parent=39 // pred_region
          %s236 = smul.u32 20, %s18
          %s237 = ssub.s32 38, %s236
          %p238 = scmp.lt.s32.totalorder %s237, 20
          %s239 = scalar_select %p238, %s237, 20
          %s240 = smul.u32 128, %s239
          %p241 = scmp.lt.s32.totalorder %s236, 37
          %s242 = scalar_select %p241, %s236, 37
          %s243 = smul.addr %s242, 8
          %s244 = scalar_lea.vmem %s0, %s243
          %s245 = smul.u32 20, %s18
          %s246 = ssub.s32 38, %s245
          %p247 = scmp.lt.s32.totalorder %s246, 20
          %s248 = scalar_select %p247, %s246, 20
          %s249 = smul.u32 128, %s248
        $region44: #{tpu_custom_call.1} parent=39 // pred_fallthru
          _
      $region40: #{tpu_custom_call.1} parent=5 // pred_fallthru
        _
      %p250 = scmp.le.s32.totalorder 1, %s18
      %p251 = scmp.lt.s32.totalorder %s18, 3
      %p252 = pnand %p250, %p251
      %p253 = pneg %p252
      // Predicated region
      $region45: #{tpu_custom_call.1} parent=5 // pred_check
        _
      $region46: #{tpu_custom_call.1} parent=5 // pred_check_branch
        %255 = sbr.rel (%p252) target = $region48
      $region47: #{tpu_custom_call.1} parent=5 // pred_region
        %s256 = ssub.s32 %s18, 1
        %s257 = smul.u32 20, %s23
        %s258 = ssub.s32 38, %s257
        %p259 = scmp.lt.s32.totalorder %s258, 20
        %s260 = scalar_select %p259, %s258, 20
        %s261 = smul.u32 128, %s260
        %p262 = scmp.lt.s32.totalorder %s257, 37
        %s263 = scalar_select %p262, %s257, 37
        %s264 = smul.addr %s263, 8
        %s265 = scalar_lea.vmem %s0, %s264
        %p266 = pneg %p44
        %p267 = pneg %p41
        %p268 = pneg %p65
        %p269 = pneg %p62
        %p270 = pneg %p86
        %p271 = pneg %p83
        %p272 = pneg %p107
        %p273 = pneg %p104
        %p274 = pneg %p128
        %p275 = pneg %p125
        %p276 = pneg %p149
        %p277 = pneg %p146
        %p278 = pneg %p170
        %p279 = pneg %p167
        %p280 = pneg %p196
        %p281 = pneg %p193
        %s282 = sand.u32 %s183, 1
        %s283 = scalar_lea.sflag [#allocation4], %s282
        %s284 = sand.u32 %s183, 1
        %s285 = smul.addr %s284, 2
        %s286 = scalar_lea.vmem [#allocation3], %s285
        %s287 = smul.u32 20, %s23
        %s288 = ssub.s32 38, %s287
        %p289 = scmp.lt.s32.totalorder %s288, 20
        %s290 = scalar_select %p289, %s288, 20
        %s291 = smul.u32 128, %s290
        %p292 = scmp.lt.s32.totalorder %s287, 37
        %s293 = scalar_select %p292, %s287, 37
        %s294 = smul.addr %s293, 8
        %s295 = scalar_lea.vmem %s0, %s294
        %s296 = smul.u32 20, %s23
        %s297 = ssub.s32 38, %s296
        %p298 = scmp.lt.s32.totalorder %s297, 20
        %s299 = scalar_select %p298, %s297, 20
        %s300 = smul.u32 128, %s299
        %v302 = vld [vmem:[%s295] sm:$0xff]
        %v303 = vld [vmem:[%s295 + $0x8] sm:$0xff]
        %v304 = vld [vmem:[%s295 + $0x10] sm:$0xff]
        %v305 = vld [vmem:[%s295 + $0x18] sm:$0xff]
        %v306 = vld [vmem:[%s295 + $0x20] sm:$0xff]
        %v307 = vld [vmem:[%s295 + $0x28] sm:$0xff]
        %v308 = vld [vmem:[%s295 + $0x30] sm:$0xff]
        %v309 = vld [vmem:[%s295 + $0x38] sm:$0xff]
        %v310 = vld [vmem:[%s295 + $0x40] sm:$0xff]
        %v311 = vld [vmem:[%s295 + $0x48] sm:$0xff]
        %v312 = vld [vmem:[%s295 + $0x50] sm:$0xff]
        %v313 = vld [vmem:[%s295 + $0x58] sm:$0xff]
        %v314 = vld [vmem:[%s295 + $0x60] sm:$0xff]
        %v315 = vld [vmem:[%s295 + $0x68] sm:$0xff]
        %v316 = vld [vmem:[%s295 + $0x70] sm:$0xff]
        %v317 = vld [vmem:[%s295 + $0x78] sm:$0xff]
        %v318 = vld [vmem:[%s295 + $0x80] sm:$0xff]
        %v319 = vld [vmem:[%s295 + $0x88] sm:$0xff]
        %v320 = vld [vmem:[%s295 + $0x90] sm:$0xff]
        %v321 = vld [vmem:[%s295 + $0x98] sm:$0xff]
        %v322 = vpack.c.bf16 %v303, %v302
        %v323 = vpack.c.bf16 %v305, %v304
        %v324 = vpack.c.bf16 %v307, %v306
        %v325 = vpack.c.bf16 %v309, %v308
        %v326 = vpack.c.bf16 %v311, %v310
        %v327 = vpack.c.bf16 %v313, %v312
        %v328 = vpack.c.bf16 %v315, %v314
        %v329 = vpack.c.bf16 %v317, %v316
        %v330 = vpack.c.bf16 %v319, %v318
        %v331 = vpack.c.bf16 %v321, %v320
        %v332 = vld [vmem:[%s1] sm:$0xf]
        %v333 = vld [vmem:[%s1 + $0x4] sm:$0xf]
        %v334 = vld [vmem:[%s1 + $0x8] sm:$0xf]
        %v335 = vld [vmem:[%s1 + $0xc] sm:$0xf]
        %v336 = vld [vmem:[%s1 + $0x10] sm:$0xf]
        %v337 = vld [vmem:[%s1 + $0x14] sm:$0xf]
        %v338 = vld [vmem:[%s1 + $0x18] sm:$0xf]
        %v339 = vld [vmem:[%s1 + $0x1c] sm:$0xf]
        %v340 = vld [vmem:[%s2] sm:$0x1]
        %v342 = vlaneseq
        %v343 = vshrl.u32 %v342, 7
        %v344 = vsub.s32 0, %v343
        %v345 = vrot.slane %v340, %v344
        %v355 = vunpack.c.l.b16 %v332
        %v356 = vunpack.c.l.b16 %v333
        %v357 = vunpack.c.l.b16 %v334
        %v358 = vunpack.c.l.b16 %v335
        %v359 = vunpack.c.l.b16 %v336
        %v360 = vunpack.c.l.b16 %v337
        %v361 = vunpack.c.l.b16 %v338
        %v362 = vunpack.c.l.b16 %v339
        %v363 = vpack.c.b16 %v356, %v355
        %v364 = vpack.c.b16 %v358, %v357
        %v365 = vpack.c.b16 %v360, %v359
        %v366 = vpack.c.b16 %v362, %v361
        %vm371 = vcmask 523264
        %v373 = vsel %vm371, %v322, 0
        %v376 = vsel %vm371, %v323, 0
        %v379 = vsel %vm371, %v324, 0
        %v382 = vsel %vm371, %v325, 0
        %v385 = vsel %vm371, %v326, 0
        %v388 = vsel %vm371, %v327, 0
        %v391 = vsel %vm371, %v328, 0
        %v394 = vsel %vm371, %v329, 0
        %v397 = vsel %vm371, %v330, 0
        %v400 = vsel %vm371, %v331, 0
        %402 = vmatprep.subr.bf16.mxu0 0
        %403 = vmatpush1.bf16.msra.mxu0 0
        %404 = vmatprep.subr.bf16.mxu0 0
        %405 = vmatpush1.bf16.msra.mxu0 0
        %406 = vmatprep.subr.bf16.mxu0 0
        %407 = vmatpush1.bf16.msra.mxu0 0
        %408 = vmatprep.subr.bf16.mxu0 0
        %409 = vmatpush1.bf16.msra.mxu0 0
        %410 = vmatprep.subr.bf16.mxu0 0
        %411 = vmatpush1.bf16.msra.mxu0 %v366
        %412 = vmatprep.subr.bf16.mxu0 0
        %413 = vmatpush1.bf16.msra.mxu0 %v365
        %414 = vmatprep.subr.bf16.mxu0 0
        %415 = vmatpush1.bf16.msra.mxu0 %v364
        %416 = vmatprep.subr.bf16.mxu0 0
        %417 = vmatpush1.bf16.msra.mxu0 %v363
        %418 = vmatprep.subr.bf16.mxu0 0
        %419 = vmatpush2.bf16.msra.mxu0 0
        %420 = vmatprep.subr.bf16.mxu0 0
        %421 = vmatpush2.bf16.msra.mxu0 0
        %422 = vmatprep.subr.bf16.mxu0 0
        %423 = vmatpush2.bf16.msra.mxu0 0
        %424 = vmatprep.subr.bf16.mxu0 0
        %425 = vmatpush2.bf16.msra.mxu0 0
        %426 = vmatprep.subr.bf16.mxu0 0
        %427 = vmatpush2.bf16.msra.mxu0 0
        %428 = vmatprep.subr.bf16.mxu0 0
        %429 = vmatpush2.bf16.msra.mxu0 0
        %430 = vmatprep.subr.bf16.mxu0 0
        %431 = vmatpush2.bf16.msra.mxu0 0
        %432 = vmatprep.subr.bf16.mxu0 0
        %433 = vmatpush2.bf16.msra.mxu0 0
        %434 = vmatprep.mubr.bf16.mxu0 0
        %435 = vmatmul.mubr.bf16.gmra.mxu0 %v373
        %v436 = vpop.f32.mrf.mxu0
        %v437 = vadd.f32 %v345, %v436
        %v438 = vpop.f32.mrf.mxu0
        %v439 = vpop.f32.mrf.mxu0
        %v440 = vadd.f32 %v345, %v439
        %v441 = vpop.f32.mrf.mxu0
        %442 = vmatprep.mubr.bf16.mxu0 0
        %443 = vmatmul.mubr.bf16.gmra.mxu0 %v376
        %v444 = vpop.f32.mrf.mxu0
        %v445 = vadd.f32 %v345, %v444
        %v446 = vpop.f32.mrf.mxu0
        %v447 = vpop.f32.mrf.mxu0
        %v448 = vadd.f32 %v345, %v447
        %v449 = vpop.f32.mrf.mxu0
        %450 = vmatprep.mubr.bf16.mxu0 0
        %451 = vmatmul.mubr.bf16.gmra.mxu0 %v379
        %v452 = vpop.f32.mrf.mxu0
        %v453 = vadd.f32 %v345, %v452
        %v454 = vpop.f32.mrf.mxu0
        %v455 = vpop.f32.mrf.mxu0
        %v456 = vadd.f32 %v345, %v455
        %v457 = vpop.f32.mrf.mxu0
        %458 = vmatprep.mubr.bf16.mxu0 0
        %459 = vmatmul.mubr.bf16.gmra.mxu0 %v382
        %v460 = vpop.f32.mrf.mxu0
        %v461 = vadd.f32 %v345, %v460
        %v462 = vpop.f32.mrf.mxu0
        %v463 = vpop.f32.mrf.mxu0
        %v464 = vadd.f32 %v345, %v463
        %v465 = vpop.f32.mrf.mxu0
        %466 = vmatprep.mubr.bf16.mxu0 0
        %467 = vmatmul.mubr.bf16.gmra.mxu0 %v385
        %v468 = vpop.f32.mrf.mxu0
        %v469 = vadd.f32 %v345, %v468
        %v470 = vpop.f32.mrf.mxu0
        %v471 = vpop.f32.mrf.mxu0
        %v472 = vadd.f32 %v345, %v471
        %v473 = vpop.f32.mrf.mxu0
        %474 = vmatprep.mubr.bf16.mxu0 0
        %475 = vmatmul.mubr.bf16.gmra.mxu0 %v388
        %v476 = vpop.f32.mrf.mxu0
        %v477 = vadd.f32 %v345, %v476
        %v478 = vpop.f32.mrf.mxu0
        %v479 = vpop.f32.mrf.mxu0
        %v480 = vadd.f32 %v345, %v479
        %v481 = vpop.f32.mrf.mxu0
        %482 = vmatprep.mubr.bf16.mxu0 0
        %483 = vmatmul.mubr.bf16.gmra.mxu0 %v391
        %v484 = vpop.f32.mrf.mxu0
        %v485 = vadd.f32 %v345, %v484
        %v486 = vpop.f32.mrf.mxu0
        %v487 = vpop.f32.mrf.mxu0
        %v488 = vadd.f32 %v345, %v487
        %v489 = vpop.f32.mrf.mxu0
        %490 = vmatprep.mubr.bf16.mxu0 0
        %491 = vmatmul.mubr.bf16.gmra.mxu0 %v394
        %v492 = vpop.f32.mrf.mxu0
        %v493 = vadd.f32 %v345, %v492
        %v494 = vpop.f32.mrf.mxu0
        %v495 = vpop.f32.mrf.mxu0
        %v496 = vadd.f32 %v345, %v495
        %v497 = vpop.f32.mrf.mxu0
        %498 = vmatprep.mubr.bf16.mxu0 0
        %499 = vmatmul.mubr.bf16.gmra.mxu0 %v397
        %v500 = vpop.f32.mrf.mxu0
        %v501 = vadd.f32 %v345, %v500
        %v502 = vpop.f32.mrf.mxu0
        %v503 = vpop.f32.mrf.mxu0
        %v504 = vadd.f32 %v345, %v503
        %v505 = vpop.f32.mrf.mxu0
        %506 = vmatprep.mubr.bf16.mxu0 0
        %507 = vmatmul.mubr.bf16.gmra.mxu0 %v400
        %v508 = vpop.f32.mrf.mxu0
        %v509 = vadd.f32 %v345, %v508
        %v510 = vpop.f32.mrf.mxu0
        %v511 = vpop.f32.mrf.mxu0
        %v512 = vadd.f32 %v345, %v511
        %v513 = vpop.f32.mrf.mxu0
        %514 = vdwg.mxu0
        %v515 = vmul.f32 %v437, 0.2
        %v516 = vmul.f32 %v440, 0.2
        %v517 = vmul.f32 %v445, 0.2
        %v518 = vmul.f32 %v448, 0.2
        %v519 = vmul.f32 %v453, 0.2
        %v520 = vmul.f32 %v456, 0.2
        %v521 = vmul.f32 %v461, 0.2
        %v522 = vmul.f32 %v464, 0.2
        %v523 = vmul.f32 %v469, 0.2
        %v524 = vmul.f32 %v472, 0.2
        %v525 = vmul.f32 %v477, 0.2
        %v526 = vmul.f32 %v480, 0.2
        %v527 = vmul.f32 %v485, 0.2
        %v528 = vmul.f32 %v488, 0.2
        %v529 = vmul.f32 %v493, 0.2
        %v530 = vmul.f32 %v496, 0.2
        %v531 = vmul.f32 %v501, 0.2
        %v532 = vmul.f32 %v504, 0.2
        %v533 = vmul.f32 %v509, 0.2
        %v534 = vmul.f32 %v512, 0.2
        %v535 = vmax.f32 %v437, %v515
        %v536 = vmax.f32 %v440, %v516
        %v537 = vmax.f32 %v445, %v517
        %v538 = vmax.f32 %v448, %v518
        %v539 = vmax.f32 %v453, %v519
        %v540 = vmax.f32 %v456, %v520
        %v541 = vmax.f32 %v461, %v521
        %v542 = vmax.f32 %v464, %v522
        %v543 = vmax.f32 %v469, %v523
        %v544 = vmax.f32 %v472, %v524
        %v545 = vmax.f32 %v477, %v525
        %v546 = vmax.f32 %v480, %v526
        %v547 = vmax.f32 %v485, %v527
        %v548 = vmax.f32 %v488, %v528
        %v549 = vmax.f32 %v493, %v529
        %v550 = vmax.f32 %v496, %v530
        %v551 = vmax.f32 %v501, %v531
        %v552 = vmax.f32 %v504, %v532
        %v553 = vmax.f32 %v509, %v533
        %v554 = vmax.f32 %v512, %v534
        %v555 = vpack.c.bf16 %v536, %v535
        %v556 = vpack.c.bf16 %v538, %v537
        %v557 = vpack.c.bf16 %v540, %v539
        %v558 = vpack.c.bf16 %v542, %v541
        %v559 = vpack.c.bf16 %v544, %v543
        %v560 = vpack.c.bf16 %v546, %v545
        %v561 = vpack.c.bf16 %v548, %v547
        %v562 = vpack.c.bf16 %v550, %v549
        %v563 = vpack.c.bf16 %v552, %v551
        %v564 = vpack.c.bf16 %v554, %v553
        %v565 = vld [vmem:[%s3] sm:$0xf]
        %v566 = vld [vmem:[%s3 + $0x4] sm:$0xf]
        %v567 = vld [vmem:[%s3 + $0x8] sm:$0xf]
        %v568 = vld [vmem:[%s3 + $0xc] sm:$0xf]
        %v569 = vld [vmem:[%s3 + $0x10] sm:$0xf]
        %v570 = vld [vmem:[%s3 + $0x14] sm:$0xf]
        %v571 = vld [vmem:[%s3 + $0x18] sm:$0xf]
        %v572 = vld [vmem:[%s3 + $0x1c] sm:$0xf]
        %v573 = vld [vmem:[%s3 + $0x20] sm:$0xf]
        %v574 = vld [vmem:[%s3 + $0x24] sm:$0xf]
        %v575 = vld [vmem:[%s3 + $0x28] sm:$0xf]
        %v576 = vld [vmem:[%s3 + $0x2c] sm:$0xf]
        %v577 = vld [vmem:[%s3 + $0x30] sm:$0xf]
        %v578 = vld [vmem:[%s3 + $0x34] sm:$0xf]
        %v579 = vld [vmem:[%s3 + $0x38] sm:$0xf]
        %v580 = vld [vmem:[%s3 + $0x3c] sm:$0xf]
        %v581 = vld [vmem:[%s4] sm:$0x1]
        %v583 = vlaneseq
        %v584 = vshrl.u32 %v583, 7
        %v585 = vsub.s32 0, %v584
        %v586 = vrot.slane %v581, %v585
        %v604 = vunpack.c.l.b16 %v565
        %v605 = vunpack.c.l.b16 %v566
        %v606 = vunpack.c.l.b16 %v567
        %v607 = vunpack.c.l.b16 %v568
        %v608 = vunpack.c.l.b16 %v569
        %v609 = vunpack.c.l.b16 %v570
        %v610 = vunpack.c.l.b16 %v571
        %v611 = vunpack.c.l.b16 %v572
        %v612 = vunpack.c.l.b16 %v573
        %v613 = vunpack.c.l.b16 %v574
        %v614 = vunpack.c.l.b16 %v575
        %v615 = vunpack.c.l.b16 %v576
        %v616 = vunpack.c.l.b16 %v577
        %v617 = vunpack.c.l.b16 %v578
        %v618 = vunpack.c.l.b16 %v579
        %v619 = vunpack.c.l.b16 %v580
        %v620 = vpack.c.b16 %v605, %v604
        %v621 = vpack.c.b16 %v607, %v606
        %v622 = vpack.c.b16 %v609, %v608
        %v623 = vpack.c.b16 %v611, %v610
        %v624 = vpack.c.b16 %v613, %v612
        %v625 = vpack.c.b16 %v615, %v614
        %v626 = vpack.c.b16 %v617, %v616
        %v627 = vpack.c.b16 %v619, %v618
        %636 = vmatprep.subr.bf16.mxu0 0
        %637 = vmatpush1.bf16.msra.mxu0 %v627
        %638 = vmatprep.subr.bf16.mxu0 0
        %639 = vmatpush1.bf16.msra.mxu0 %v626
        %640 = vmatprep.subr.bf16.mxu0 0
        %641 = vmatpush1.bf16.msra.mxu0 %v625
        %642 = vmatprep.subr.bf16.mxu0 0
        %643 = vmatpush1.bf16.msra.mxu0 %v624
        %644 = vmatprep.subr.bf16.mxu0 0
        %645 = vmatpush1.bf16.msra.mxu0 %v623
        %646 = vmatprep.subr.bf16.mxu0 0
        %647 = vmatpush1.bf16.msra.mxu0 %v622
        %648 = vmatprep.subr.bf16.mxu0 0
        %649 = vmatpush1.bf16.msra.mxu0 %v621
        %650 = vmatprep.subr.bf16.mxu0 0
        %651 = vmatpush1.bf16.msra.mxu0 %v620
        %652 = vmatprep.subr.bf16.mxu0 0
        %653 = vmatpush2.bf16.msra.mxu0 0
        %654 = vmatprep.subr.bf16.mxu0 0
        %655 = vmatpush2.bf16.msra.mxu0 0
        %656 = vmatprep.subr.bf16.mxu0 0
        %657 = vmatpush2.bf16.msra.mxu0 0
        %658 = vmatprep.subr.bf16.mxu0 0
        %659 = vmatpush2.bf16.msra.mxu0 0
        %660 = vmatprep.subr.bf16.mxu0 0
        %661 = vmatpush2.bf16.msra.mxu0 0
        %662 = vmatprep.subr.bf16.mxu0 0
        %663 = vmatpush2.bf16.msra.mxu0 0
        %664 = vmatprep.subr.bf16.mxu0 0
        %665 = vmatpush2.bf16.msra.mxu0 0
        %666 = vmatprep.subr.bf16.mxu0 0
        %667 = vmatpush2.bf16.msra.mxu0 0
        %668 = vmatprep.mubr.bf16.mxu0 0
        %669 = vmatmul.mubr.bf16.gmra.mxu0 %v555
        %v670 = vpop.f32.mrf.mxu0
        %v671 = vadd.f32 %v586, %v670
        %v672 = vpop.f32.mrf.mxu0
        %v673 = vpop.f32.mrf.mxu0
        %v674 = vadd.f32 %v586, %v673
        %v675 = vpop.f32.mrf.mxu0
        %676 = vmatprep.mubr.bf16.mxu0 0
        %677 = vmatmul.mubr.bf16.gmra.mxu0 %v556
        %v678 = vpop.f32.mrf.mxu0
        %v679 = vadd.f32 %v586, %v678
        %v680 = vpop.f32.mrf.mxu0
        %v681 = vpop.f32.mrf.mxu0
        %v682 = vadd.f32 %v586, %v681
        %v683 = vpop.f32.mrf.mxu0
        %684 = vmatprep.mubr.bf16.mxu0 0
        %685 = vmatmul.mubr.bf16.gmra.mxu0 %v557
        %v686 = vpop.f32.mrf.mxu0
        %v687 = vadd.f32 %v586, %v686
        %v688 = vpop.f32.mrf.mxu0
        %v689 = vpop.f32.mrf.mxu0
        %v690 = vadd.f32 %v586, %v689
        %v691 = vpop.f32.mrf.mxu0
        %692 = vmatprep.mubr.bf16.mxu0 0
        %693 = vmatmul.mubr.bf16.gmra.mxu0 %v558
        %v694 = vpop.f32.mrf.mxu0
        %v695 = vadd.f32 %v586, %v694
        %v696 = vpop.f32.mrf.mxu0
        %v697 = vpop.f32.mrf.mxu0
        %v698 = vadd.f32 %v586, %v697
        %v699 = vpop.f32.mrf.mxu0
        %700 = vmatprep.mubr.bf16.mxu0 0
        %701 = vmatmul.mubr.bf16.gmra.mxu0 %v559
        %v702 = vpop.f32.mrf.mxu0
        %v703 = vadd.f32 %v586, %v702
        %v704 = vpop.f32.mrf.mxu0
        %v705 = vpop.f32.mrf.mxu0
        %v706 = vadd.f32 %v586, %v705
        %v707 = vpop.f32.mrf.mxu0
        %708 = vmatprep.mubr.bf16.mxu0 0
        %709 = vmatmul.mubr.bf16.gmra.mxu0 %v560
        %v710 = vpop.f32.mrf.mxu0
        %v711 = vadd.f32 %v586, %v710
        %v712 = vpop.f32.mrf.mxu0
        %v713 = vpop.f32.mrf.mxu0
        %v714 = vadd.f32 %v586, %v713
        %v715 = vpop.f32.mrf.mxu0
        %716 = vmatprep.mubr.bf16.mxu0 0
        %717 = vmatmul.mubr.bf16.gmra.mxu0 %v561
        %v718 = vpop.f32.mrf.mxu0
        %v719 = vadd.f32 %v586, %v718
        %v720 = vpop.f32.mrf.mxu0
        %v721 = vpop.f32.mrf.mxu0
        %v722 = vadd.f32 %v586, %v721
        %v723 = vpop.f32.mrf.mxu0
        %724 = vmatprep.mubr.bf16.mxu0 0
        %725 = vmatmul.mubr.bf16.gmra.mxu0 %v562
        %v726 = vpop.f32.mrf.mxu0
        %v727 = vadd.f32 %v586, %v726
        %v728 = vpop.f32.mrf.mxu0
        %v729 = vpop.f32.mrf.mxu0
        %v730 = vadd.f32 %v586, %v729
        %v731 = vpop.f32.mrf.mxu0
        %732 = vmatprep.mubr.bf16.mxu0 0
        %733 = vmatmul.mubr.bf16.gmra.mxu0 %v563
        %v734 = vpop.f32.mrf.mxu0
        %v735 = vadd.f32 %v586, %v734
        %v736 = vpop.f32.mrf.mxu0
        %v737 = vpop.f32.mrf.mxu0
        %v738 = vadd.f32 %v586, %v737
        %v739 = vpop.f32.mrf.mxu0
        %740 = vmatprep.mubr.bf16.mxu0 0
        %741 = vmatmul.mubr.bf16.gmra.mxu0 %v564
        %v742 = vpop.f32.mrf.mxu0
        %v743 = vadd.f32 %v586, %v742
        %v744 = vpop.f32.mrf.mxu0
        %v745 = vpop.f32.mrf.mxu0
        %v746 = vadd.f32 %v586, %v745
        %v747 = vpop.f32.mrf.mxu0
        %748 = vdwg.mxu0
        %v749 = vmul.f32 %v671, 0.2
        %v750 = vmul.f32 %v674, 0.2
        %v751 = vmul.f32 %v679, 0.2
        %v752 = vmul.f32 %v682, 0.2
        %v753 = vmul.f32 %v687, 0.2
        %v754 = vmul.f32 %v690, 0.2
        %v755 = vmul.f32 %v695, 0.2
        %v756 = vmul.f32 %v698, 0.2
        %v757 = vmul.f32 %v703, 0.2
        %v758 = vmul.f32 %v706, 0.2
        %v759 = vmul.f32 %v711, 0.2
        %v760 = vmul.f32 %v714, 0.2
        %v761 = vmul.f32 %v719, 0.2
        %v762 = vmul.f32 %v722, 0.2
        %v763 = vmul.f32 %v727, 0.2
        %v764 = vmul.f32 %v730, 0.2
        %v765 = vmul.f32 %v735, 0.2
        %v766 = vmul.f32 %v738, 0.2
        %v767 = vmul.f32 %v743, 0.2
        %v768 = vmul.f32 %v746, 0.2
        %v769 = vmax.f32 %v671, %v749
        %v770 = vmax.f32 %v674, %v750
        %v771 = vmax.f32 %v679, %v751
        %v772 = vmax.f32 %v682, %v752
        %v773 = vmax.f32 %v687, %v753
        %v774 = vmax.f32 %v690, %v754
        %v775 = vmax.f32 %v695, %v755
        %v776 = vmax.f32 %v698, %v756
        %v777 = vmax.f32 %v703, %v757
        %v778 = vmax.f32 %v706, %v758
        %v779 = vmax.f32 %v711, %v759
        %v780 = vmax.f32 %v714, %v760
        %v781 = vmax.f32 %v719, %v761
        %v782 = vmax.f32 %v722, %v762
        %v783 = vmax.f32 %v727, %v763
        %v784 = vmax.f32 %v730, %v764
        %v785 = vmax.f32 %v735, %v765
        %v786 = vmax.f32 %v738, %v766
        %v787 = vmax.f32 %v743, %v767
        %v788 = vmax.f32 %v746, %v768
        %v789 = vld [vmem:[%s5] sm:$0x1]
        %v790 = vpack.c.bf16 %v770, %v769
        %v791 = vpack.c.bf16 %v772, %v771
        %v792 = vpack.c.bf16 %v774, %v773
        %v793 = vpack.c.bf16 %v776, %v775
        %v794 = vpack.c.bf16 %v778, %v777
        %v795 = vpack.c.bf16 %v780, %v779
        %v796 = vpack.c.bf16 %v782, %v781
        %v797 = vpack.c.bf16 %v784, %v783
        %v798 = vpack.c.bf16 %v786, %v785
        %v799 = vpack.c.bf16 %v788, %v787
        %v800 = vld [vmem:[#allocation2] sm:$0x1]
        %802 = vset.pattern.permute.xlu0 0
        %803 = vperm.xlu0 %802, %v800
        %v804 = vpop.permute.xlu0 %803
        %v806 = vlaneseq
        %v807 = vshrl.u32 %v806, 7
        %v808 = vsub.s32 0, %v807
        %v809 = vrot.slane %v804, %v808
        %810 = vmatprep.subr.bf16.mxu0 0
        %811 = vmatpush1.bf16.xpose.msra.mxu0 %v797
        %812 = vmatprep.subr.bf16.mxu0 0
        %813 = vmatpush1.bf16.xpose.msra.mxu0 %v796
        %814 = vmatprep.subr.bf16.mxu0 0
        %815 = vmatpush1.bf16.xpose.msra.mxu0 %v795
        %816 = vmatprep.subr.bf16.mxu0 0
        %817 = vmatpush1.bf16.xpose.msra.mxu0 %v794
        %818 = vmatprep.subr.bf16.mxu0 0
        %819 = vmatpush1.bf16.xpose.msra.mxu0 %v793
        %820 = vmatprep.subr.bf16.mxu0 0
        %821 = vmatpush1.bf16.xpose.msra.mxu0 %v792
        %822 = vmatprep.subr.bf16.mxu0 0
        %823 = vmatpush1.bf16.xpose.msra.mxu0 %v791
        %824 = vmatprep.subr.bf16.mxu0 0
        %825 = vmatpush1.bf16.xpose.msra.mxu0 %v790
        %826 = vmatprep.subr.bf16.mxu0 0
        %827 = vmatpush2.bf16.xpose.msra.mxu0 0
        %828 = vmatprep.subr.bf16.mxu0 0
        %829 = vmatpush2.bf16.xpose.msra.mxu0 0
        %830 = vmatprep.subr.bf16.mxu0 0
        %831 = vmatpush2.bf16.xpose.msra.mxu0 0
        %832 = vmatprep.subr.bf16.mxu0 0
        %833 = vmatpush2.bf16.xpose.msra.mxu0 0
        %834 = vmatprep.subr.bf16.mxu0 0
        %835 = vmatpush2.bf16.xpose.msra.mxu0 0
        %836 = vmatprep.subr.bf16.mxu0 0
        %837 = vmatpush2.bf16.xpose.msra.mxu0 0
        %838 = vmatprep.subr.bf16.mxu0 0
        %839 = vmatpush2.bf16.xpose.msra.mxu0 %v799
        %840 = vmatprep.subr.bf16.mxu0 0
        %841 = vmatpush2.bf16.xpose.msra.mxu0 %v798
        %842 = vmatprep.mubr.bf16.mxu0 0
        %843 = vmatmul.mubr.bf16.gmra.mxu0 %v789
        %v844 = vpop.f32.mrf.mxu0
        %v845 = vadd.f32 %v809, %v844
        %v846 = vpop.f32.mrf.mxu0
        %v847 = vadd.f32 %v809, %v846
        %v848 = vpop.f32.mrf.mxu0
        %v849 = vpop.f32.mrf.mxu0
        %850 = vdwg.mxu0
        %v851 = vxor.u32 %v845, 2147483648
        %v852 = vxor.u32 %v847, 2147483648
        %v853 = vmul.f32 %v851, 1.442695
        %v854 = vpow.pop %v853
        %v855 = vmul.f32 %v852, 1.442695
        %v856 = vpow.pop %v855
        %v857 = vadd.f32 %v854, 1.0
        %v858 = vadd.f32 %v856, 1.0
        %v859 = vrcp.pop %v857
        %v860 = vmul.f32 1.0, %v859
        %v861 = vrcp.pop %v858
        %v862 = vmul.f32 1.0, %v861
        %v865 = vcombine.low %v860, %v862
        %v867 = vunpack.c.l.s4 1966171168
        %v868 = vunpack.c.0.s8 %v867
        %v869 = vlaneseq
        %v870 = vshrl.u32 %v869, 7
        %v871 = vsub.s32 %v868, %v870
        %v872 = vrot.slane %v865, %v871
        %v874 = vunpack.c.l.s4 1966171168
        %v875 = vunpack.c.0.s8 %v874
        %v876 = vlaneseq
        %v877 = vshrl.u32 %v876, 7
        %v878 = vsub.s32 %v875, %v877
        %v879 = vrot.slane %v872, %v878
        %v881 = vlaneseq
        %vm882 = vcmp.ge.s32.totalorder %v881, 0
        %vm883 = vcmp.lt.s32.totalorder %v881, 160
        %vm884 = vmand %vm882, %vm883
        %885 = vst.msk [vmem:[%s286] sm:$0x3] %vm884, %v879
        %s886 = sand.u32 %s183, 1
        %s887 = scalar_lea.sflag [#allocation4], %s886
        %s888 = sand.u32 %s183, 1
        %s889 = smul.addr %s888, 2
        %s890 = scalar_lea.vmem [#allocation3], %s889
        // Predicated region
        $region49: #{tpu_custom_call.1} parent=47 // pred_check
          %p891 = pneg %p193
        $region50: #{tpu_custom_call.1} parent=47 // pred_check_branch
          %893 = sbr.rel (%p891) target = $region52
        $region51: #{tpu_custom_call.1} parent=47 // pred_region
          %s895 = ssub.s32 32, 32
          %896 = vsyncadd %s887, %s895
          %s897 = smul.addr %s23, 2
          %s898 = smul.addr %s897, 16
          %s899 = scalar_lea.hbm %s7, %s898
          %s901 = sshll.u32 %s890, 4
          %s902 = int_to_ptr.vmem [resolvable:$true] %s901
          %904 = dma.vmem_to_hbm [thread:$0]  %s902, 32, %s899, %s887
        $region52: #{tpu_custom_call.1} parent=47 // pred_fallthru
          _
      $region48: #{tpu_custom_call.1} parent=5 // pred_fallthru
        _
      %p905 = scmp.le.s32.totalorder 2, %s18
      // Predicated region
      $region53: #{tpu_custom_call.1} parent=5 // pred_check
        %p906 = pneg %p905
      $region54: #{tpu_custom_call.1} parent=5 // pred_check_branch
        %908 = sbr.rel (%p906) target = $region56
      $region55: #{tpu_custom_call.1} parent=5 // pred_region
        %s909 = ssub.s32 %s18, 2
        // Predicated region
        $region57: #{tpu_custom_call.1} parent=55 // pred_check
          %p910 = pneg %p199
        $region58: #{tpu_custom_call.1} parent=55 // pred_check_branch
          %912 = sbr.rel (%p910) target = $region60
        $region59: #{tpu_custom_call.1} parent=55 // pred_region
          %s913 = sand.u32 %s184, 1
          %s914 = scalar_lea.sflag [#allocation4], %s913
          %s915 = sand.u32 %s184, 1
          %s916 = smul.addr %s915, 2
          %s917 = scalar_lea.vmem [#allocation3], %s916
          %918 = dma.done %s914, 32
        $region60: #{tpu_custom_call.1} parent=55 // pred_fallthru
          _
      $region56: #{tpu_custom_call.1} parent=5 // pred_fallthru
        _
    $region6: #{tpu_custom_call.1} parent=1 // loop_footer
      %s22 = sadd.s32 1, %s18
    $region7: #{tpu_custom_call.1} parent=1 // loop_footer_branch
      %17 = sbr.rel target = $region3
    $region8: #{tpu_custom_call.1} parent=1 // loop_exit
      _
    %919 = vsyncpa [#allocation4], 1
    %s920 = scalar_lea.sflag [#allocation4], 1
    %921 = vsyncpa %s920, 1

// kernel: tpu_custom_call.1
$region0: #{tpu_custom_call.1}
  #allocation0 [shape = 'u32[]', space=smem, size = 0x4, offset = 0x4, fixed_abs, tag = 'smem constant byte address 0x4 - core index']
  #allocation1 [shape = 'u32[144,128]{1,0:T(1,128)}', space=vmem, size = 0x12000, scoped, tag = 'internal scratch']
  #allocation2 [shape = 'f32[1,1]{1,0:T(1,128)S(1)}', space=vmem, size = 0x200, scoped, tag = 'scoped memory for tpu_custom_call.1']
  %s0 = inlined_call_operand.vmem [shape: f32[300,64], index: 0, kind: input, shape index: {}]
  %s1 = inlined_call_operand.vmem [shape: bf16[64,128], index: 1, kind: input, shape index: {}]
  %s2 = inlined_call_operand.vmem [shape: f32[1,128], index: 2, kind: input, shape index: {}]
  %s3 = inlined_call_operand.vmem [shape: bf16[128,128], index: 3, kind: input, shape index: {}]
  %s4 = inlined_call_operand.vmem [shape: f32[1,128], index: 4, kind: input, shape index: {}]
  %s5 = inlined_call_operand.vmem [shape: bf16[1,128], index: 5, kind: input, shape index: {}]
  %s6 = inlined_call_operand.<no memory space> [shape: f32[1,1], index: 6, kind: input, shape index: {}]
  %s7 = inlined_call_operand.hbm [shape: f32[2,1,160], index: 7, kind: output, shape index: {}]
  %s8 = sld [smem:[#allocation0]]
  $region61: #{tpu_custom_call.1} parent=0
    _
  %s10 = ssub.s32 1, %s8
  %s11 = scalar_select 0, %s10, %s8
  %v12 = vstv %s6
  %13 = vst [vmem:[#allocation2] sm:$0x1] %v12
  $region1: #{tpu_custom_call.1} parent=0
    #allocation3 [shape = 'u8[2048]{0}', space=vmem, size = 0x800, scoped, tag = 'output window, operand 0']
    #allocation4 [shape = 's32[2]{0}', space=sflag, size = 0x8, scoped, tag = 'scoped memory for tpu_custom_call.1']
    %14 = vsyncpa [#allocation4], 0
    %s15 = scalar_lea.sflag [#allocation4], 1
    %16 = vsyncpa %s15, 0
    loop: start=0, step=1, limit=4
    $region2: #{tpu_custom_call.1} parent=1 // loop_pre_header
      _
    $region3: #{tpu_custom_call.1} parent=1 // loop_header
      %s18 = sphi 0, %s22
      %p19 = scmp.ge.s32.totalorder %s18, 4
      %s28 = sphi 0, %s30
      %s31 = sphi 0, %s28
      %s32 = sphi 0, %s31
      %s48 = sphi 0, %s32
      %s52 = sphi 0, %s52
      %s54 = sphi 0, %s52
      %s55 = sphi 0, %s54
      %s69 = sphi 0, %s55
      %s73 = sphi 0, %s73
      %s75 = sphi 0, %s73
      %s76 = sphi 0, %s75
      %s90 = sphi 0, %s76
      %s94 = sphi 0, %s94
      %s96 = sphi 0, %s94
      %s97 = sphi 0, %s96
      %s111 = sphi 0, %s97
      %s115 = sphi 0, %s115
      %s117 = sphi 0, %s115
      %s118 = sphi 0, %s117
      %s132 = sphi 0, %s118
      %s136 = sphi 0, %s136
      %s138 = sphi 0, %s136
      %s139 = sphi 0, %s138
      %s153 = sphi 0, %s139
      %s157 = sphi 0, %s157
      %s159 = sphi 0, %s157
      %s160 = sphi 0, %s159
      %s174 = sphi 0, %s160
      %s180 = sphi 0, %s182
      %s183 = sphi 0, %s180
      %s184 = sphi 0, %s183
      %s200 = sphi 0, %s184
    $region4: #{tpu_custom_call.1} parent=1 // loop_header_branch
      %21 = sbr.rel (%p19) target = $region8
    $region5: #{tpu_custom_call.1} parent=1 // loop_body
      %s23 = ssub.s32 %s18, 1
      %s24 = ssub.s32 %s18, 2
      %s25 = sadd.s32 %s18, 1
      %s26 = ssub.s32 %s18, %s25
      %p27 = scmp.eq.s32.totalorder %s26, 0
      %s29 = sadd.s32 %s28, 1
      %s30 = scalar_select %p27, %s28, %s29
      %p33 = pneg %p27
      %p34 = scmp.eq.s32.totalorder %s18, 1
      %p35 = por %p33, %p34
      %p36 = scmp.ne.s32.totalorder %s28, %s31
      %p37 = scmp.eq.s32.totalorder %s18, 0
      %p38 = por %p36, %p37
      %p39 = scmp.ne.s32.totalorder %s28, %s31
      %p40 = scmp.eq.s32.totalorder %s23, 1
      %p41 = por %p39, %p40
      %p42 = scmp.ne.s32.totalorder %s31, %s32
      %p43 = scmp.eq.s32.totalorder %s23, 0
      %p44 = por %p42, %p43
      %p45 = scmp.ne.s32.totalorder %s31, %s32
      %p46 = scmp.eq.s32.totalorder %s24, 1
      %p47 = por %p45, %p46
      %p49 = scmp.ne.s32.totalorder %s32, %s48
      %p50 = scmp.eq.s32.totalorder %s24, 0
      %p51 = por %p49, %p50
      %s53 = sadd.s32 %s52, 1
      %p56 = scmp.eq.s32.totalorder %s18, 1
      %p57 = scmp.ne.s32.totalorder %s52, %s54
      %p58 = scmp.eq.s32.totalorder %s18, 0
      %p59 = por %p57, %p58
      %p60 = scmp.ne.s32.totalorder %s52, %s54
      %p61 = scmp.eq.s32.totalorder %s23, 1
      %p62 = por %p60, %p61
      %p63 = scmp.ne.s32.totalorder %s54, %s55
      %p64 = scmp.eq.s32.totalorder %s23, 0
      %p65 = por %p63, %p64
      %p66 = scmp.ne.s32.totalorder %s54, %s55
      %p67 = scmp.eq.s32.totalorder %s24, 1
      %p68 = por %p66, %p67
      %p70 = scmp.ne.s32.totalorder %s55, %s69
      %p71 = scmp.eq.s32.totalorder %s24, 0
      %p72 = por %p70, %p71
      %s74 = sadd.s32 %s73, 1
      %p77 = scmp.eq.s32.totalorder %s18, 1
      %p78 = scmp.ne.s32.totalorder %s73, %s75
      %p79 = scmp.eq.s32.totalorder %s18, 0
      %p80 = por %p78, %p79
      %p81 = scmp.ne.s32.totalorder %s73, %s75
      %p82 = scmp.eq.s32.totalorder %s23, 1
      %p83 = por %p81, %p82
      %p84 = scmp.ne.s32.totalorder %s75, %s76
      %p85 = scmp.eq.s32.totalorder %s23, 0
      %p86 = por %p84, %p85
      %p87 = scmp.ne.s32.totalorder %s75, %s76
      %p88 = scmp.eq.s32.totalorder %s24, 1
      %p89 = por %p87, %p88
      %p91 = scmp.ne.s32.totalorder %s76, %s90
      %p92 = scmp.eq.s32.totalorder %s24, 0
      %p93 = por %p91, %p92
      %s95 = sadd.s32 %s94, 1
      %p98 = scmp.eq.s32.totalorder %s18, 1
      %p99 = scmp.ne.s32.totalorder %s94, %s96
      %p100 = scmp.eq.s32.totalorder %s18, 0
      %p101 = por %p99, %p100
      %p102 = scmp.ne.s32.totalorder %s94, %s96
      %p103 = scmp.eq.s32.totalorder %s23, 1
      %p104 = por %p102, %p103
      %p105 = scmp.ne.s32.totalorder %s96, %s97
      %p106 = scmp.eq.s32.totalorder %s23, 0
      %p107 = por %p105, %p106
      %p108 = scmp.ne.s32.totalorder %s96, %s97
      %p109 = scmp.eq.s32.totalorder %s24, 1
      %p110 = por %p108, %p109
      %p112 = scmp.ne.s32.totalorder %s97, %s111
      %p113 = scmp.eq.s32.totalorder %s24, 0
      %p114 = por %p112, %p113
      %s116 = sadd.s32 %s115, 1
      %p119 = scmp.eq.s32.totalorder %s18, 1
      %p120 = scmp.ne.s32.totalorder %s115, %s117
      %p121 = scmp.eq.s32.totalorder %s18, 0
      %p122 = por %p120, %p121
      %p123 = scmp.ne.s32.totalorder %s115, %s117
      %p124 = scmp.eq.s32.totalorder %s23, 1
      %p125 = por %p123, %p124
      %p126 = scmp.ne.s32.totalorder %s117, %s118
      %p127 = scmp.eq.s32.totalorder %s23, 0
      %p128 = por %p126, %p127
      %p129 = scmp.ne.s32.totalorder %s117, %s118
      %p130 = scmp.eq.s32.totalorder %s24, 1
      %p131 = por %p129, %p130
      %p133 = scmp.ne.s32.totalorder %s118, %s132
      %p134 = scmp.eq.s32.totalorder %s24, 0
      %p135 = por %p133, %p134
      %s137 = sadd.s32 %s136, 1
      %p140 = scmp.eq.s32.totalorder %s18, 1
      %p141 = scmp.ne.s32.totalorder %s136, %s138
      %p142 = scmp.eq.s32.totalorder %s18, 0
      %p143 = por %p141, %p142
      %p144 = scmp.ne.s32.totalorder %s136, %s138
      %p145 = scmp.eq.s32.totalorder %s23, 1
      %p146 = por %p144, %p145
      %p147 = scmp.ne.s32.totalorder %s138, %s139
      %p148 = scmp.eq.s32.totalorder %s23, 0
      %p149 = por %p147, %p148
      %p150 = scmp.ne.s32.totalorder %s138, %s139
      %p151 = scmp.eq.s32.totalorder %s24, 1
      %p152 = por %p150, %p151
      %p154 = scmp.ne.s32.totalorder %s139, %s153
      %p155 = scmp.eq.s32.totalorder %s24, 0
      %p156 = por %p154, %p155
      %s158 = sadd.s32 %s157, 1
      %p161 = scmp.eq.s32.totalorder %s18, 1
      %p162 = scmp.ne.s32.totalorder %s157, %s159
      %p163 = scmp.eq.s32.totalorder %s18, 0
      %p164 = por %p162, %p163
      %p165 = scmp.ne.s32.totalorder %s157, %s159
      %p166 = scmp.eq.s32.totalorder %s23, 1
      %p167 = por %p165, %p166
      %p168 = scmp.ne.s32.totalorder %s159, %s160
      %p169 = scmp.eq.s32.totalorder %s23, 0
      %p170 = por %p168, %p169
      %p171 = scmp.ne.s32.totalorder %s159, %s160
      %p172 = scmp.eq.s32.totalorder %s24, 1
      %p173 = por %p171, %p172
      %p175 = scmp.ne.s32.totalorder %s160, %s174
      %p176 = scmp.eq.s32.totalorder %s24, 0
      %p177 = por %p175, %p176
      %s178 = ssub.s32 %s18, %s25
      %p179 = scmp.eq.s32.totalorder %s178, 0
      %s181 = sadd.s32 %s180, 1
      %s182 = scalar_select %p179, %s180, %s181
      %p185 = pneg %p179
      %p186 = scmp.eq.s32.totalorder %s18, 1
      %p187 = por %p185, %p186
      %p188 = scmp.ne.s32.totalorder %s180, %s183
      %p189 = scmp.eq.s32.totalorder %s18, 0
      %p190 = por %p188, %p189
      %p191 = scmp.ne.s32.totalorder %s180, %s183
      %p192 = scmp.eq.s32.totalorder %s23, 1
      %p193 = por %p191, %p192
      %p194 = scmp.ne.s32.totalorder %s183, %s184
      %p195 = scmp.eq.s32.totalorder %s23, 0
      %p196 = por %p194, %p195
      %p197 = scmp.ne.s32.totalorder %s183, %s184
      %p198 = scmp.eq.s32.totalorder %s24, 1
      %p199 = por %p197, %p198
      %p201 = scmp.ne.s32.totalorder %s184, %s200
      %p202 = scmp.eq.s32.totalorder %s24, 0
      %p203 = por %p201, %p202
      %p204 = scmp.le.s32.totalorder 1, %s18
      %p205 = scmp.lt.s32.totalorder %s18, 3
      %p206 = pnand %p204, %p205
      %p207 = pneg %p206
      // Predicated region
      $region9: #{tpu_custom_call.1} parent=5 // pred_check
        _
      $region10: #{tpu_custom_call.1} parent=5 // pred_check_branch
        %209 = sbr.rel (%p206) target = $region12
      $region11: #{tpu_custom_call.1} parent=5 // pred_region
        %s210 = ssub.s32 %s18, 1
        // Predicated region
        $region13: #{tpu_custom_call.1} parent=11 // pred_check
          %p211 = pneg %p65
        $region14: #{tpu_custom_call.1} parent=11 // pred_check_branch
          %213 = sbr.rel (%p211) target = $region16
        $region15: #{tpu_custom_call.1} parent=11 // pred_region
          _
        $region16: #{tpu_custom_call.1} parent=11 // pred_fallthru
          _
        // Predicated region
        $region17: #{tpu_custom_call.1} parent=11 // pred_check
          %p214 = pneg %p86
        $region18: #{tpu_custom_call.1} parent=11 // pred_check_branch
          %216 = sbr.rel (%p214) target = $region20
        $region19: #{tpu_custom_call.1} parent=11 // pred_region
          _
        $region20: #{tpu_custom_call.1} parent=11 // pred_fallthru
          _
        // Predicated region
        $region21: #{tpu_custom_call.1} parent=11 // pred_check
          %p217 = pneg %p107
        $region22: #{tpu_custom_call.1} parent=11 // pred_check_branch
          %219 = sbr.rel (%p217) target = $region24
        $region23: #{tpu_custom_call.1} parent=11 // pred_region
          _
        $region24: #{tpu_custom_call.1} parent=11 // pred_fallthru
          _
        // Predicated region
        $region25: #{tpu_custom_call.1} parent=11 // pred_check
          %p220 = pneg %p128
        $region26: #{tpu_custom_call.1} parent=11 // pred_check_branch
          %222 = sbr.rel (%p220) target = $region28
        $region27: #{tpu_custom_call.1} parent=11 // pred_region
          _
        $region28: #{tpu_custom_call.1} parent=11 // pred_fallthru
          _
        // Predicated region
        $region29: #{tpu_custom_call.1} parent=11 // pred_check
          %p223 = pneg %p149
        $region30: #{tpu_custom_call.1} parent=11 // pred_check_branch
          %225 = sbr.rel (%p223) target = $region32
        $region31: #{tpu_custom_call.1} parent=11 // pred_region
          _
        $region32: #{tpu_custom_call.1} parent=11 // pred_fallthru
          _
        // Predicated region
        $region33: #{tpu_custom_call.1} parent=11 // pred_check
          %p226 = pneg %p170
        $region34: #{tpu_custom_call.1} parent=11 // pred_check_branch
          %228 = sbr.rel (%p226) target = $region36
        $region35: #{tpu_custom_call.1} parent=11 // pred_region
          _
        $region36: #{tpu_custom_call.1} parent=11 // pred_fallthru
          _
      $region12: #{tpu_custom_call.1} parent=5 // pred_fallthru
        _
      %p229 = scmp.lt.s32.totalorder %s18, 2
      // Predicated region
      $region37: #{tpu_custom_call.1} parent=5 // pred_check
        %p230 = pneg %p229
      $region38: #{tpu_custom_call.1} parent=5 // pred_check_branch
        %232 = sbr.rel (%p230) target = $region40
      $region39: #{tpu_custom_call.1} parent=5 // pred_region
        // Predicated region
        $region41: #{tpu_custom_call.1} parent=39 // pred_check
          %p233 = pneg %p38
        $region42: #{tpu_custom_call.1} parent=39 // pred_check_branch
          %235 = sbr.rel (%p233) target = $region44
        $region43: #{tpu_custom_call.1} parent=39 // pred_region
          %s236 = smul.u32 20, %s18
          %s237 = ssub.s32 38, %s236
          %p238 = scmp.lt.s32.totalorder %s237, 20
          %s239 = scalar_select %p238, %s237, 20
          %s240 = smul.u32 128, %s239
          %p241 = scmp.lt.s32.totalorder %s236, 37
          %s242 = scalar_select %p241, %s236, 37
          %s243 = smul.addr %s242, 8
          %s244 = scalar_lea.vmem %s0, %s243
          %s245 = smul.u32 20, %s18
          %s246 = ssub.s32 38, %s245
          %p247 = scmp.lt.s32.totalorder %s246, 20
          %s248 = scalar_select %p247, %s246, 20
          %s249 = smul.u32 128, %s248
        $region44: #{tpu_custom_call.1} parent=39 // pred_fallthru
          _
      $region40: #{tpu_custom_call.1} parent=5 // pred_fallthru
        _
      %p250 = scmp.le.s32.totalorder 1, %s18
      %p251 = scmp.lt.s32.totalorder %s18, 3
      %p252 = pnand %p250, %p251
      %p253 = pneg %p252
      // Predicated region
      $region45: #{tpu_custom_call.1} parent=5 // pred_check
        _
      $region46: #{tpu_custom_call.1} parent=5 // pred_check_branch
        %255 = sbr.rel (%p252) target = $region48
      $region47: #{tpu_custom_call.1} parent=5 // pred_region
        %s256 = ssub.s32 %s18, 1
        %s257 = smul.u32 20, %s23
        %s258 = ssub.s32 38, %s257
        %p259 = scmp.lt.s32.totalorder %s258, 20
        %s260 = scalar_select %p259, %s258, 20
        %s261 = smul.u32 128, %s260
        %p262 = scmp.lt.s32.totalorder %s257, 37
        %s263 = scalar_select %p262, %s257, 37
        %s264 = smul.addr %s263, 8
        %s265 = scalar_lea.vmem %s0, %s264
        %p266 = pneg %p44
        %p267 = pneg %p41
        %p268 = pneg %p65
        %p269 = pneg %p62
        %p270 = pneg %p86
        %p271 = pneg %p83
        %p272 = pneg %p107
        %p273 = pneg %p104
        %p274 = pneg %p128
        %p275 = pneg %p125
        %p276 = pneg %p149
        %p277 = pneg %p146
        %p278 = pneg %p170
        %p279 = pneg %p167
        %p280 = pneg %p196
        %p281 = pneg %p193
        %s282 = sand.u32 %s183, 1
        %s283 = scalar_lea.sflag [#allocation4], %s282
        %s284 = sand.u32 %s183, 1
        %s285 = smul.addr %s284, 2
        %s286 = scalar_lea.vmem [#allocation3], %s285
        %s287 = smul.u32 20, %s23
        %s288 = ssub.s32 38, %s287
        %p289 = scmp.lt.s32.totalorder %s288, 20
        %s290 = scalar_select %p289, %s288, 20
        %s291 = smul.u32 128, %s290
        %p292 = scmp.lt.s32.totalorder %s287, 37
        %s293 = scalar_select %p292, %s287, 37
        %s294 = smul.addr %s293, 8
        %s295 = scalar_lea.vmem %s0, %s294
        %s296 = smul.u32 20, %s23
        %s297 = ssub.s32 38, %s296
        %p298 = scmp.lt.s32.totalorder %s297, 20
        %s299 = scalar_select %p298, %s297, 20
        %s300 = smul.u32 128, %s299
        %v302 = vld [vmem:[%s295] sm:$0xff]
        %v303 = vld [vmem:[%s295 + $0x8] sm:$0xff]
        %v304 = vld [vmem:[%s295 + $0x10] sm:$0xff]
        %v305 = vld [vmem:[%s295 + $0x18] sm:$0xff]
        %v306 = vld [vmem:[%s295 + $0x20] sm:$0xff]
        %v307 = vld [vmem:[%s295 + $0x28] sm:$0xff]
        %v308 = vld [vmem:[%s295 + $0x30] sm:$0xff]
        %v309 = vld [vmem:[%s295 + $0x38] sm:$0xff]
        %v310 = vld [vmem:[%s295 + $0x40] sm:$0xff]
        %v311 = vld [vmem:[%s295 + $0x48] sm:$0xff]
        %v312 = vld [vmem:[%s295 + $0x50] sm:$0xff]
        %v313 = vld [vmem:[%s295 + $0x58] sm:$0xff]
        %v314 = vld [vmem:[%s295 + $0x60] sm:$0xff]
        %v315 = vld [vmem:[%s295 + $0x68] sm:$0xff]
        %v316 = vld [vmem:[%s295 + $0x70] sm:$0xff]
        %v317 = vld [vmem:[%s295 + $0x78] sm:$0xff]
        %v318 = vld [vmem:[%s295 + $0x80] sm:$0xff]
        %v319 = vld [vmem:[%s295 + $0x88] sm:$0xff]
        %v320 = vld [vmem:[%s295 + $0x90] sm:$0xff]
        %v321 = vld [vmem:[%s295 + $0x98] sm:$0xff]
        %v322 = vpack.c.bf16 %v303, %v302
        %v323 = vpack.c.bf16 %v305, %v304
        %v324 = vpack.c.bf16 %v307, %v306
        %v325 = vpack.c.bf16 %v309, %v308
        %v326 = vpack.c.bf16 %v311, %v310
        %v327 = vpack.c.bf16 %v313, %v312
        %v328 = vpack.c.bf16 %v315, %v314
        %v329 = vpack.c.bf16 %v317, %v316
        %v330 = vpack.c.bf16 %v319, %v318
        %v331 = vpack.c.bf16 %v321, %v320
        %v332 = vld [vmem:[%s1] sm:$0xf]
        %v333 = vld [vmem:[%s1 + $0x4] sm:$0xf]
        %v334 = vld [vmem:[%s1 + $0x8] sm:$0xf]
        %v335 = vld [vmem:[%s1 + $0xc] sm:$0xf]
        %v336 = vld [vmem:[%s1 + $0x10] sm:$0xf]
        %v337 = vld [vmem:[%s1 + $0x14] sm:$0xf]
        %v338 = vld [vmem:[%s1 + $0x18] sm:$0xf]
        %v339 = vld [vmem:[%s1 + $0x1c] sm:$0xf]
        %v340 = vld [vmem:[%s2] sm:$0x1]
        %v342 = vlaneseq
        %v343 = vshrl.u32 %v342, 7
        %v344 = vsub.s32 0, %v343
        %v345 = vrot.slane %v340, %v344
        %v355 = vunpack.c.l.b16 %v332
        %v356 = vunpack.c.l.b16 %v333
        %v357 = vunpack.c.l.b16 %v334
        %v358 = vunpack.c.l.b16 %v335
        %v359 = vunpack.c.l.b16 %v336
        %v360 = vunpack.c.l.b16 %v337
        %v361 = vunpack.c.l.b16 %v338
        %v362 = vunpack.c.l.b16 %v339
        %v363 = vpack.c.b16 %v356, %v355
        %v364 = vpack.c.b16 %v358, %v357
        %v365 = vpack.c.b16 %v360, %v359
        %v366 = vpack.c.b16 %v362, %v361
        %vm371 = vcmask 523264
        %v373 = vsel %vm371, %v322, 0
        %v376 = vsel %vm371, %v323, 0
        %v379 = vsel %vm371, %v324, 0
        %v382 = vsel %vm371, %v325, 0
        %v385 = vsel %vm371, %v326, 0
        %v388 = vsel %vm371, %v327, 0
        %v391 = vsel %vm371, %v328, 0
        %v394 = vsel %vm371, %v329, 0
        %v397 = vsel %vm371, %v330, 0
        %v400 = vsel %vm371, %v331, 0
        %402 = vmatprep.subr.bf16.mxu0 0
        %403 = vmatpush1.bf16.msra.mxu0 0
        %404 = vmatprep.subr.bf16.mxu0 0
        %405 = vmatpush1.bf16.msra.mxu0 0
        %406 = vmatprep.subr.bf16.mxu0 0
        %407 = vmatpush1.bf16.msra.mxu0 0
        %408 = vmatprep.subr.bf16.mxu0 0
        %409 = vmatpush1.bf16.msra.mxu0 0
        %410 = vmatprep.subr.bf16.mxu0 0
        %411 = vmatpush1.bf16.msra.mxu0 %v366
        %412 = vmatprep.subr.bf16.mxu0 0
        %413 = vmatpush1.bf16.msra.mxu0 %v365
        %414 = vmatprep.subr.bf16.mxu0 0
        %415 = vmatpush1.bf16.msra.mxu0 %v364
        %416 = vmatprep.subr.bf16.mxu0 0
        %417 = vmatpush1.bf16.msra.mxu0 %v363
        %418 = vmatprep.subr.bf16.mxu0 0
        %419 = vmatpush2.bf16.msra.mxu0 0
        %420 = vmatprep.subr.bf16.mxu0 0
        %421 = vmatpush2.bf16.msra.mxu0 0
        %422 = vmatprep.subr.bf16.mxu0 0
        %423 = vmatpush2.bf16.msra.mxu0 0
        %424 = vmatprep.subr.bf16.mxu0 0
        %425 = vmatpush2.bf16.msra.mxu0 0
        %426 = vmatprep.subr.bf16.mxu0 0
        %427 = vmatpush2.bf16.msra.mxu0 0
        %428 = vmatprep.subr.bf16.mxu0 0
        %429 = vmatpush2.bf16.msra.mxu0 0
        %430 = vmatprep.subr.bf16.mxu0 0
        %431 = vmatpush2.bf16.msra.mxu0 0
        %432 = vmatprep.subr.bf16.mxu0 0
        %433 = vmatpush2.bf16.msra.mxu0 0
        %434 = vmatprep.mubr.bf16.mxu0 0
        %435 = vmatmul.mubr.bf16.gmra.mxu0 %v373
        %v436 = vpop.f32.mrf.mxu0
        %v437 = vadd.f32 %v345, %v436
        %v438 = vpop.f32.mrf.mxu0
        %v439 = vpop.f32.mrf.mxu0
        %v440 = vadd.f32 %v345, %v439
        %v441 = vpop.f32.mrf.mxu0
        %442 = vmatprep.mubr.bf16.mxu0 0
        %443 = vmatmul.mubr.bf16.gmra.mxu0 %v376
        %v444 = vpop.f32.mrf.mxu0
        %v445 = vadd.f32 %v345, %v444
        %v446 = vpop.f32.mrf.mxu0
        %v447 = vpop.f32.mrf.mxu0
        %v448 = vadd.f32 %v345, %v447
        %v449 = vpop.f32.mrf.mxu0
        %450 = vmatprep.mubr.bf16.mxu0 0
        %451 = vmatmul.mubr.bf16.gmra.mxu0 %v379
        %v452 = vpop.f32.mrf.mxu0
        %v453 = vadd.f32 %v345, %v452
        %v454 = vpop.f32.mrf.mxu0
        %v455 = vpop.f32.mrf.mxu0
        %v456 = vadd.f32 %v345, %v455
        %v457 = vpop.f32.mrf.mxu0
        %458 = vmatprep.mubr.bf16.mxu0 0
        %459 = vmatmul.mubr.bf16.gmra.mxu0 %v382
        %v460 = vpop.f32.mrf.mxu0
        %v461 = vadd.f32 %v345, %v460
        %v462 = vpop.f32.mrf.mxu0
        %v463 = vpop.f32.mrf.mxu0
        %v464 = vadd.f32 %v345, %v463
        %v465 = vpop.f32.mrf.mxu0
        %466 = vmatprep.mubr.bf16.mxu0 0
        %467 = vmatmul.mubr.bf16.gmra.mxu0 %v385
        %v468 = vpop.f32.mrf.mxu0
        %v469 = vadd.f32 %v345, %v468
        %v470 = vpop.f32.mrf.mxu0
        %v471 = vpop.f32.mrf.mxu0
        %v472 = vadd.f32 %v345, %v471
        %v473 = vpop.f32.mrf.mxu0
        %474 = vmatprep.mubr.bf16.mxu0 0
        %475 = vmatmul.mubr.bf16.gmra.mxu0 %v388
        %v476 = vpop.f32.mrf.mxu0
        %v477 = vadd.f32 %v345, %v476
        %v478 = vpop.f32.mrf.mxu0
        %v479 = vpop.f32.mrf.mxu0
        %v480 = vadd.f32 %v345, %v479
        %v481 = vpop.f32.mrf.mxu0
        %482 = vmatprep.mubr.bf16.mxu0 0
        %483 = vmatmul.mubr.bf16.gmra.mxu0 %v391
        %v484 = vpop.f32.mrf.mxu0
        %v485 = vadd.f32 %v345, %v484
        %v486 = vpop.f32.mrf.mxu0
        %v487 = vpop.f32.mrf.mxu0
        %v488 = vadd.f32 %v345, %v487
        %v489 = vpop.f32.mrf.mxu0
        %490 = vmatprep.mubr.bf16.mxu0 0
        %491 = vmatmul.mubr.bf16.gmra.mxu0 %v394
        %v492 = vpop.f32.mrf.mxu0
        %v493 = vadd.f32 %v345, %v492
        %v494 = vpop.f32.mrf.mxu0
        %v495 = vpop.f32.mrf.mxu0
        %v496 = vadd.f32 %v345, %v495
        %v497 = vpop.f32.mrf.mxu0
        %498 = vmatprep.mubr.bf16.mxu0 0
        %499 = vmatmul.mubr.bf16.gmra.mxu0 %v397
        %v500 = vpop.f32.mrf.mxu0
        %v501 = vadd.f32 %v345, %v500
        %v502 = vpop.f32.mrf.mxu0
        %v503 = vpop.f32.mrf.mxu0
        %v504 = vadd.f32 %v345, %v503
        %v505 = vpop.f32.mrf.mxu0
        %506 = vmatprep.mubr.bf16.mxu0 0
        %507 = vmatmul.mubr.bf16.gmra.mxu0 %v400
        %v508 = vpop.f32.mrf.mxu0
        %v509 = vadd.f32 %v345, %v508
        %v510 = vpop.f32.mrf.mxu0
        %v511 = vpop.f32.mrf.mxu0
        %v512 = vadd.f32 %v345, %v511
        %v513 = vpop.f32.mrf.mxu0
        %514 = vdwg.mxu0
        %v515 = vmul.f32 %v437, 0.2
        %v516 = vmul.f32 %v440, 0.2
        %v517 = vmul.f32 %v445, 0.2
        %v518 = vmul.f32 %v448, 0.2
        %v519 = vmul.f32 %v453, 0.2
        %v520 = vmul.f32 %v456, 0.2
        %v521 = vmul.f32 %v461, 0.2
        %v522 = vmul.f32 %v464, 0.2
        %v523 = vmul.f32 %v469, 0.2
        %v524 = vmul.f32 %v472, 0.2
        %v525 = vmul.f32 %v477, 0.2
        %v526 = vmul.f32 %v480, 0.2
        %v527 = vmul.f32 %v485, 0.2
        %v528 = vmul.f32 %v488, 0.2
        %v529 = vmul.f32 %v493, 0.2
        %v530 = vmul.f32 %v496, 0.2
        %v531 = vmul.f32 %v501, 0.2
        %v532 = vmul.f32 %v504, 0.2
        %v533 = vmul.f32 %v509, 0.2
        %v534 = vmul.f32 %v512, 0.2
        %v535 = vmax.f32 %v437, %v515
        %v536 = vmax.f32 %v440, %v516
        %v537 = vmax.f32 %v445, %v517
        %v538 = vmax.f32 %v448, %v518
        %v539 = vmax.f32 %v453, %v519
        %v540 = vmax.f32 %v456, %v520
        %v541 = vmax.f32 %v461, %v521
        %v542 = vmax.f32 %v464, %v522
        %v543 = vmax.f32 %v469, %v523
        %v544 = vmax.f32 %v472, %v524
        %v545 = vmax.f32 %v477, %v525
        %v546 = vmax.f32 %v480, %v526
        %v547 = vmax.f32 %v485, %v527
        %v548 = vmax.f32 %v488, %v528
        %v549 = vmax.f32 %v493, %v529
        %v550 = vmax.f32 %v496, %v530
        %v551 = vmax.f32 %v501, %v531
        %v552 = vmax.f32 %v504, %v532
        %v553 = vmax.f32 %v509, %v533
        %v554 = vmax.f32 %v512, %v534
        %v555 = vpack.c.bf16 %v536, %v535
        %v556 = vpack.c.bf16 %v538, %v537
        %v557 = vpack.c.bf16 %v540, %v539
        %v558 = vpack.c.bf16 %v542, %v541
        %v559 = vpack.c.bf16 %v544, %v543
        %v560 = vpack.c.bf16 %v546, %v545
        %v561 = vpack.c.bf16 %v548, %v547
        %v562 = vpack.c.bf16 %v550, %v549
        %v563 = vpack.c.bf16 %v552, %v551
        %v564 = vpack.c.bf16 %v554, %v553
        %v565 = vld [vmem:[%s3] sm:$0xf]
        %v566 = vld [vmem:[%s3 + $0x4] sm:$0xf]
        %v567 = vld [vmem:[%s3 + $0x8] sm:$0xf]
        %v568 = vld [vmem:[%s3 + $0xc] sm:$0xf]
        %v569 = vld [vmem:[%s3 + $0x10] sm:$0xf]
        %v570 = vld [vmem:[%s3 + $0x14] sm:$0xf]
        %v571 = vld [vmem:[%s3 + $0x18] sm:$0xf]
        %v572 = vld [vmem:[%s3 + $0x1c] sm:$0xf]
        %v573 = vld [vmem:[%s3 + $0x20] sm:$0xf]
        %v574 = vld [vmem:[%s3 + $0x24] sm:$0xf]
        %v575 = vld [vmem:[%s3 + $0x28] sm:$0xf]
        %v576 = vld [vmem:[%s3 + $0x2c] sm:$0xf]
        %v577 = vld [vmem:[%s3 + $0x30] sm:$0xf]
        %v578 = vld [vmem:[%s3 + $0x34] sm:$0xf]
        %v579 = vld [vmem:[%s3 + $0x38] sm:$0xf]
        %v580 = vld [vmem:[%s3 + $0x3c] sm:$0xf]
        %v581 = vld [vmem:[%s4] sm:$0x1]
        %v583 = vlaneseq
        %v584 = vshrl.u32 %v583, 7
        %v585 = vsub.s32 0, %v584
        %v586 = vrot.slane %v581, %v585
        %v604 = vunpack.c.l.b16 %v565
        %v605 = vunpack.c.l.b16 %v566
        %v606 = vunpack.c.l.b16 %v567
        %v607 = vunpack.c.l.b16 %v568
        %v608 = vunpack.c.l.b16 %v569
        %v609 = vunpack.c.l.b16 %v570
        %v610 = vunpack.c.l.b16 %v571
        %v611 = vunpack.c.l.b16 %v572
        %v612 = vunpack.c.l.b16 %v573
        %v613 = vunpack.c.l.b16 %v574
        %v614 = vunpack.c.l.b16 %v575
        %v615 = vunpack.c.l.b16 %v576
        %v616 = vunpack.c.l.b16 %v577
        %v617 = vunpack.c.l.b16 %v578
        %v618 = vunpack.c.l.b16 %v579
        %v619 = vunpack.c.l.b16 %v580
        %v620 = vpack.c.b16 %v605, %v604
        %v621 = vpack.c.b16 %v607, %v606
        %v622 = vpack.c.b16 %v609, %v608
        %v623 = vpack.c.b16 %v611, %v610
        %v624 = vpack.c.b16 %v613, %v612
        %v625 = vpack.c.b16 %v615, %v614
        %v626 = vpack.c.b16 %v617, %v616
        %v627 = vpack.c.b16 %v619, %v618
        %636 = vmatprep.subr.bf16.mxu0 0
        %637 = vmatpush1.bf16.msra.mxu0 %v627
        %638 = vmatprep.subr.bf16.mxu0 0
        %639 = vmatpush1.bf16.msra.mxu0 %v626
        %640 = vmatprep.subr.bf16.mxu0 0
        %641 = vmatpush1.bf16.msra.mxu0 %v625
        %642 = vmatprep.subr.bf16.mxu0 0
        %643 = vmatpush1.bf16.msra.mxu0 %v624
        %644 = vmatprep.subr.bf16.mxu0 0
        %645 = vmatpush1.bf16.msra.mxu0 %v623
        %646 = vmatprep.subr.bf16.mxu0 0
        %647 = vmatpush1.bf16.msra.mxu0 %v622
        %648 = vmatprep.subr.bf16.mxu0 0
        %649 = vmatpush1.bf16.msra.mxu0 %v621
        %650 = vmatprep.subr.bf16.mxu0 0
        %651 = vmatpush1.bf16.msra.mxu0 %v620
        %652 = vmatprep.subr.bf16.mxu0 0
        %653 = vmatpush2.bf16.msra.mxu0 0
        %654 = vmatprep.subr.bf16.mxu0 0
        %655 = vmatpush2.bf16.msra.mxu0 0
        %656 = vmatprep.subr.bf16.mxu0 0
        %657 = vmatpush2.bf16.msra.mxu0 0
        %658 = vmatprep.subr.bf16.mxu0 0
        %659 = vmatpush2.bf16.msra.mxu0 0
        %660 = vmatprep.subr.bf16.mxu0 0
        %661 = vmatpush2.bf16.msra.mxu0 0
        %662 = vmatprep.subr.bf16.mxu0 0
        %663 = vmatpush2.bf16.msra.mxu0 0
        %664 = vmatprep.subr.bf16.mxu0 0
        %665 = vmatpush2.bf16.msra.mxu0 0
        %666 = vmatprep.subr.bf16.mxu0 0
        %667 = vmatpush2.bf16.msra.mxu0 0
        %668 = vmatprep.mubr.bf16.mxu0 0
        %669 = vmatmul.mubr.bf16.gmra.mxu0 %v555
        %v670 = vpop.f32.mrf.mxu0
        %v671 = vadd.f32 %v586, %v670
        %v672 = vpop.f32.mrf.mxu0
        %v673 = vpop.f32.mrf.mxu0
        %v674 = vadd.f32 %v586, %v673
        %v675 = vpop.f32.mrf.mxu0
        %676 = vmatprep.mubr.bf16.mxu0 0
        %677 = vmatmul.mubr.bf16.gmra.mxu0 %v556
        %v678 = vpop.f32.mrf.mxu0
        %v679 = vadd.f32 %v586, %v678
        %v680 = vpop.f32.mrf.mxu0
        %v681 = vpop.f32.mrf.mxu0
        %v682 = vadd.f32 %v586, %v681
        %v683 = vpop.f32.mrf.mxu0
        %684 = vmatprep.mubr.bf16.mxu0 0
        %685 = vmatmul.mubr.bf16.gmra.mxu0 %v557
        %v686 = vpop.f32.mrf.mxu0
        %v687 = vadd.f32 %v586, %v686
        %v688 = vpop.f32.mrf.mxu0
        %v689 = vpop.f32.mrf.mxu0
        %v690 = vadd.f32 %v586, %v689
        %v691 = vpop.f32.mrf.mxu0
        %692 = vmatprep.mubr.bf16.mxu0 0
        %693 = vmatmul.mubr.bf16.gmra.mxu0 %v558
        %v694 = vpop.f32.mrf.mxu0
        %v695 = vadd.f32 %v586, %v694
        %v696 = vpop.f32.mrf.mxu0
        %v697 = vpop.f32.mrf.mxu0
        %v698 = vadd.f32 %v586, %v697
        %v699 = vpop.f32.mrf.mxu0
        %700 = vmatprep.mubr.bf16.mxu0 0
        %701 = vmatmul.mubr.bf16.gmra.mxu0 %v559
        %v702 = vpop.f32.mrf.mxu0
        %v703 = vadd.f32 %v586, %v702
        %v704 = vpop.f32.mrf.mxu0
        %v705 = vpop.f32.mrf.mxu0
        %v706 = vadd.f32 %v586, %v705
        %v707 = vpop.f32.mrf.mxu0
        %708 = vmatprep.mubr.bf16.mxu0 0
        %709 = vmatmul.mubr.bf16.gmra.mxu0 %v560
        %v710 = vpop.f32.mrf.mxu0
        %v711 = vadd.f32 %v586, %v710
        %v712 = vpop.f32.mrf.mxu0
        %v713 = vpop.f32.mrf.mxu0
        %v714 = vadd.f32 %v586, %v713
        %v715 = vpop.f32.mrf.mxu0
        %716 = vmatprep.mubr.bf16.mxu0 0
        %717 = vmatmul.mubr.bf16.gmra.mxu0 %v561
        %v718 = vpop.f32.mrf.mxu0
        %v719 = vadd.f32 %v586, %v718
        %v720 = vpop.f32.mrf.mxu0
        %v721 = vpop.f32.mrf.mxu0
        %v722 = vadd.f32 %v586, %v721
        %v723 = vpop.f32.mrf.mxu0
        %724 = vmatprep.mubr.bf16.mxu0 0
        %725 = vmatmul.mubr.bf16.gmra.mxu0 %v562
        %v726 = vpop.f32.mrf.mxu0
        %v727 = vadd.f32 %v586, %v726
        %v728 = vpop.f32.mrf.mxu0
        %v729 = vpop.f32.mrf.mxu0
        %v730 = vadd.f32 %v586, %v729
        %v731 = vpop.f32.mrf.mxu0
        %732 = vmatprep.mubr.bf16.mxu0 0
        %733 = vmatmul.mubr.bf16.gmra.mxu0 %v563
        %v734 = vpop.f32.mrf.mxu0
        %v735 = vadd.f32 %v586, %v734
        %v736 = vpop.f32.mrf.mxu0
        %v737 = vpop.f32.mrf.mxu0
        %v738 = vadd.f32 %v586, %v737
        %v739 = vpop.f32.mrf.mxu0
        %740 = vmatprep.mubr.bf16.mxu0 0
        %741 = vmatmul.mubr.bf16.gmra.mxu0 %v564
        %v742 = vpop.f32.mrf.mxu0
        %v743 = vadd.f32 %v586, %v742
        %v744 = vpop.f32.mrf.mxu0
        %v745 = vpop.f32.mrf.mxu0
        %v746 = vadd.f32 %v586, %v745
        %v747 = vpop.f32.mrf.mxu0
        %748 = vdwg.mxu0
        %v749 = vmul.f32 %v671, 0.2
        %v750 = vmul.f32 %v674, 0.2
        %v751 = vmul.f32 %v679, 0.2
        %v752 = vmul.f32 %v682, 0.2
        %v753 = vmul.f32 %v687, 0.2
        %v754 = vmul.f32 %v690, 0.2
        %v755 = vmul.f32 %v695, 0.2
        %v756 = vmul.f32 %v698, 0.2
        %v757 = vmul.f32 %v703, 0.2
        %v758 = vmul.f32 %v706, 0.2
        %v759 = vmul.f32 %v711, 0.2
        %v760 = vmul.f32 %v714, 0.2
        %v761 = vmul.f32 %v719, 0.2
        %v762 = vmul.f32 %v722, 0.2
        %v763 = vmul.f32 %v727, 0.2
        %v764 = vmul.f32 %v730, 0.2
        %v765 = vmul.f32 %v735, 0.2
        %v766 = vmul.f32 %v738, 0.2
        %v767 = vmul.f32 %v743, 0.2
        %v768 = vmul.f32 %v746, 0.2
        %v769 = vmax.f32 %v671, %v749
        %v770 = vmax.f32 %v674, %v750
        %v771 = vmax.f32 %v679, %v751
        %v772 = vmax.f32 %v682, %v752
        %v773 = vmax.f32 %v687, %v753
        %v774 = vmax.f32 %v690, %v754
        %v775 = vmax.f32 %v695, %v755
        %v776 = vmax.f32 %v698, %v756
        %v777 = vmax.f32 %v703, %v757
        %v778 = vmax.f32 %v706, %v758
        %v779 = vmax.f32 %v711, %v759
        %v780 = vmax.f32 %v714, %v760
        %v781 = vmax.f32 %v719, %v761
        %v782 = vmax.f32 %v722, %v762
        %v783 = vmax.f32 %v727, %v763
        %v784 = vmax.f32 %v730, %v764
        %v785 = vmax.f32 %v735, %v765
        %v786 = vmax.f32 %v738, %v766
        %v787 = vmax.f32 %v743, %v767
        %v788 = vmax.f32 %v746, %v768
        %v789 = vld [vmem:[%s5] sm:$0x1]
        %v790 = vpack.c.bf16 %v770, %v769
        %v791 = vpack.c.bf16 %v772, %v771
        %v792 = vpack.c.bf16 %v774, %v773
        %v793 = vpack.c.bf16 %v776, %v775
        %v794 = vpack.c.bf16 %v778, %v777
        %v795 = vpack.c.bf16 %v780, %v779
        %v796 = vpack.c.bf16 %v782, %v781
        %v797 = vpack.c.bf16 %v784, %v783
        %v798 = vpack.c.bf16 %v786, %v785
        %v799 = vpack.c.bf16 %v788, %v787
        %v800 = vld [vmem:[#allocation2] sm:$0x1]
        %802 = vset.pattern.permute.xlu0 0
        %803 = vperm.xlu0 %802, %v800
        %v804 = vpop.permute.xlu0 %803
        %v806 = vlaneseq
        %v807 = vshrl.u32 %v806, 7
        %v808 = vsub.s32 0, %v807
        %v809 = vrot.slane %v804, %v808
        %810 = vmatprep.subr.bf16.mxu0 0
        %811 = vmatpush1.bf16.xpose.msra.mxu0 %v797
        %812 = vmatprep.subr.bf16.mxu0 0
        %813 = vmatpush1.bf16.xpose.msra.mxu0 %v796
        %814 = vmatprep.subr.bf16.mxu0 0
        %815 = vmatpush1.bf16.xpose.msra.mxu0 %v795
        %816 = vmatprep.subr.bf16.mxu0 0
        %817 = vmatpush1.bf16.xpose.msra.mxu0 %v794
        %818 = vmatprep.subr.bf16.mxu0 0
        %819 = vmatpush1.bf16.xpose.msra.mxu0 %v793
        %820 = vmatprep.subr.bf16.mxu0 0
        %821 = vmatpush1.bf16.xpose.msra.mxu0 %v792
        %822 = vmatprep.subr.bf16.mxu0 0
        %823 = vmatpush1.bf16.xpose.msra.mxu0 %v791
        %824 = vmatprep.subr.bf16.mxu0 0
        %825 = vmatpush1.bf16.xpose.msra.mxu0 %v790
        %826 = vmatprep.subr.bf16.mxu0 0
        %827 = vmatpush2.bf16.xpose.msra.mxu0 0
        %828 = vmatprep.subr.bf16.mxu0 0
        %829 = vmatpush2.bf16.xpose.msra.mxu0 0
        %830 = vmatprep.subr.bf16.mxu0 0
        %831 = vmatpush2.bf16.xpose.msra.mxu0 0
        %832 = vmatprep.subr.bf16.mxu0 0
        %833 = vmatpush2.bf16.xpose.msra.mxu0 0
        %834 = vmatprep.subr.bf16.mxu0 0
        %835 = vmatpush2.bf16.xpose.msra.mxu0 0
        %836 = vmatprep.subr.bf16.mxu0 0
        %837 = vmatpush2.bf16.xpose.msra.mxu0 0
        %838 = vmatprep.subr.bf16.mxu0 0
        %839 = vmatpush2.bf16.xpose.msra.mxu0 %v799
        %840 = vmatprep.subr.bf16.mxu0 0
        %841 = vmatpush2.bf16.xpose.msra.mxu0 %v798
        %842 = vmatprep.mubr.bf16.mxu0 0
        %843 = vmatmul.mubr.bf16.gmra.mxu0 %v789
        %v844 = vpop.f32.mrf.mxu0
        %v845 = vadd.f32 %v809, %v844
        %v846 = vpop.f32.mrf.mxu0
        %v847 = vadd.f32 %v809, %v846
        %v848 = vpop.f32.mrf.mxu0
        %v849 = vpop.f32.mrf.mxu0
        %850 = vdwg.mxu0
        %v851 = vxor.u32 %v845, 2147483648
        %v852 = vxor.u32 %v847, 2147483648
        %v853 = vmul.f32 %v851, 1.442695
        %v854 = vpow.pop %v853
        %v855 = vmul.f32 %v852, 1.442695
        %v856 = vpow.pop %v855
        %v857 = vadd.f32 %v854, 1.0
        %v858 = vadd.f32 %v856, 1.0
        %v859 = vrcp.pop %v857
        %v860 = vmul.f32 1.0, %v859
        %v861 = vrcp.pop %v858
        %v862 = vmul.f32 1.0, %v861
        %v865 = vcombine.low %v860, %v862
        %v867 = vunpack.c.l.s4 1966171168
        %v868 = vunpack.c.0.s8 %v867
        %v869 = vlaneseq
        %v870 = vshrl.u32 %v869, 7
        %v871 = vsub.s32 %v868, %v870
        %v872 = vrot.slane %v865, %v871
        %v874 = vunpack.c.l.s4 1966171168
        %v875 = vunpack.c.0.s8 %v874
        %v876 = vlaneseq
        %v877 = vshrl.u32 %v876, 7
        %v878 = vsub.s32 %v875, %v877
        %v879 = vrot.slane %v872, %v878
        %v881 = vlaneseq
        %vm882 = vcmp.ge.s32.totalorder %v881, 0
        %vm883 = vcmp.lt.s32.totalorder %v881, 160
        %vm884 = vmand %vm882, %vm883
        %885 = vst.msk [vmem:[%s286] sm:$0x3] %vm884, %v879
        %s886 = sand.u32 %s183, 1
        %s887 = scalar_lea.sflag [#allocation4], %s886
        %s888 = sand.u32 %s183, 1
        %s889 = smul.addr %s888, 2
        %s890 = scalar_lea.vmem [#allocation3], %s889
        // Predicated region
        $region49: #{tpu_custom_call.1} parent=47 // pred_check
          %p891 = pneg %p193
        $region50: #{tpu_custom_call.1} parent=47 // pred_check_branch
          %893 = sbr.rel (%p891) target = $region52
        $region51: #{tpu_custom_call.1} parent=47 // pred_region
          %s895 = ssub.s32 32, 32
          %896 = vsyncadd %s887, %s895
          %s897 = smul.addr %s23, 2
          %s898 = smul.addr %s897, 16
          %s899 = scalar_lea.hbm %s7, %s898
          %s901 = sshll.u32 %s890, 4
          %s902 = int_to_ptr.vmem [resolvable:$true] %s901
          %904 = dma.vmem_to_hbm [thread:$0]  %s902, 32, %s899, %s887
        $region52: #{tpu_custom_call.1} parent=47 // pred_fallthru
          _
      $region48: #{tpu_custom_call.1} parent=5 // pred_fallthru
        _
      %p905 = scmp.le.s32.totalorder 2, %s18
      // Predicated region
      $region53: #{tpu_custom_call.1} parent=5 // pred_check
        %p906 = pneg %p905
      $region54: #{tpu_custom_call.1} parent=5 // pred_check_branch
        %908 = sbr.rel (%p906) target = $region56
      $region55: #{tpu_custom_call.1} parent=5 // pred_region
        %s909 = ssub.s32 %s18, 2
        // Predicated region
        $region57: #{tpu_custom_call.1} parent=55 // pred_check
          %p910 = pneg %p199
        $region58: #{tpu_custom_call.1} parent=55 // pred_check_branch
          %912 = sbr.rel (%p910) target = $region60
        $region59: #{tpu_custom_call.1} parent=55 // pred_region
          %s913 = sand.u32 %s184, 1
          %s914 = scalar_lea.sflag [#allocation4], %s913
          %s915 = sand.u32 %s184, 1
          %s916 = smul.addr %s915, 2
          %s917 = scalar_lea.vmem [#allocation3], %s916
          %918 = dma.done %s914, 32
        $region60: #{tpu_custom_call.1} parent=55 // pred_fallthru
          _
      $region56: #{tpu_custom_call.1} parent=5 // pred_fallthru
        _
    $region6: #{tpu_custom_call.1} parent=1 // loop_footer
      %s22 = sadd.s32 1, %s18
    $region7: #{tpu_custom_call.1} parent=1 // loop_footer_branch
      %17 = sbr.rel target = $region3
    $region8: #{tpu_custom_call.1} parent=1 // loop_exit
      _
    %919 = vsyncpa [#allocation4], 1
    %s920 = scalar_lea.sflag [#allocation4], 1
    %921 = vsyncpa %s920, 1

</llo_original>
